<compile_context>
chip_gen: v6e
topology: v6e:2x2x1
jax: 0.10.0
libtpu: 0.0.40
codegen_flags: <defaults>
</compile_context>

<pallas_src>
from functools import partial

import jax
import jax.numpy as jnp
from jax.experimental import pallas as pl
from jax.experimental.pallas import tpu as pltpu


# ----------------------------- tiling helpers ------------------------------

def _sanitize_tile(tile_rows, n):
    """Clamp a requested row-tile to the array and (8,·) sublane constraint."""
    t = int(min(tile_rows, n))
    if t >= n:
        return int(n)
    t = max(8, (t // 8) * 8)
    return int(min(t, n))


def _auto_tile_rows(n, d, target_bytes=2 << 20):
    # ~2 MiB per (tile, D) f32 buffer: with at most 2 streamed (tile, D) arrays per kernel
    # x 2 pipeline buffers (~8 MiB live) this fits v5e's 16 MiB default scoped VMEM and
    # stays far under v7x's 64 MiB physical VMEM.
    rows = max(8, target_bytes // max(1, d * 4))
    return _sanitize_tile(rows, n)


_VMEM_LIMIT = 32 * 1024 * 1024  # safe on v5e/v6e (128 MiB phys) and v7x (64 MiB phys)


# ----------------------------- Pallas kernels ------------------------------

def _rowstats_kernel(r_ref, x_ref, sum_r_ref, sum_x_ref, min_r_ref, max_r_ref, ssq_ref):
    # r_ref/x_ref: (tile, D);  outputs: (tile, 1) per-row statistics.
    # Padded rows of a partial boundary tile produce garbage rows that Pallas clips on
    # writeback, so no masking is needed on the steady-state path.
    r = r_ref[...].astype(jnp.float32)
    x = x_ref[...].astype(jnp.float32)
    sum_r_ref[...] = jnp.sum(r, axis=1, keepdims=True)
    sum_x_ref[...] = jnp.sum(x, axis=1, keepdims=True)
    min_r_ref[...] = jnp.min(r, axis=1, keepdims=True)
    max_r_ref[...] = jnp.max(r, axis=1, keepdims=True)
    ssq_ref[...] = jnp.sum(r * r, axis=1, keepdims=True)


def row_stats(r, x, tile_rows):
    n, d = r.shape
    grid = (pl.cdiv(n, tile_rows),)
    col_spec = pl.BlockSpec((tile_rows, 1), lambda i: (i, 0))
    col_shape = jax.ShapeDtypeStruct((n, 1), jnp.float32)
    return pl.pallas_call(
        _rowstats_kernel,
        grid=grid,
        in_specs=[pl.BlockSpec((tile_rows, d), lambda i: (i, 0)),
                  pl.BlockSpec((tile_rows, d), lambda i: (i, 0))],
        out_specs=(col_spec, col_spec, col_spec, col_spec, col_spec),
        out_shape=(col_shape, col_shape, col_shape, col_shape, col_shape),
        compiler_params=pltpu.CompilerParams(
            dimension_semantics=("parallel",),
            vmem_limit_bytes=_VMEM_LIMIT),
    )(r, x)


def _affine_kernel(off_ref, coef_ref, r_ref, out_ref):
    # off_ref: SMEM (1,) global offset;  coef_ref: (tile, 1) per-row scale;
    # out = r * coef + offset  ==  ((a*nc + b) / mean)  with nc = r * k folded per row.
    out_ref[...] = r_ref[...].astype(jnp.float32) * coef_ref[...] + off_ref[0]


def apply_affine(offset, rowcoef, r, tile_rows):
    n, d = r.shape
    grid = (pl.cdiv(n, tile_rows),)
    return pl.pallas_call(
        _affine_kernel,
        grid=grid,
        in_specs=[pl.BlockSpec(memory_space=pltpu.MemorySpace.SMEM),
                  pl.BlockSpec((tile_rows, 1), lambda i: (i, 0)),
                  pl.BlockSpec((tile_rows, d), lambda i: (i, 0))],
        out_specs=pl.BlockSpec((tile_rows, d), lambda i: (i, 0)),
        out_shape=jax.ShapeDtypeStruct((n, d), jnp.float32),
        compiler_params=pltpu.CompilerParams(
            dimension_semantics=("parallel",),
            vmem_limit_bytes=_VMEM_LIMIT),
    )(offset, rowcoef, r)


# ------------------------------ forward pass --------------------------------

@partial(jax.jit, static_argnames=("num_states", "max_iters", "tile_rows"))
def _cnencoder_forward(norm_x, recon, row, col, key, *, num_states, max_iters, tile_rows):
    n, d = recon.shape

    # --- streaming per-row statistics (Pallas, fully "parallel" row grid) ---
    sum_r, sum_x, min_r, max_r, ssq = row_stats(recon, norm_x, tile_rows)
    sum_r = sum_r[:, 0]
    sum_x = sum_x[:, 0]
    min_r = min_r[:, 0]
    max_r = max_r[:, 0]
    ssq = ssq[:, 0]

    mean_vec = sum_r / jnp.float32(d)                                  # per-spot mean (N,)

    # --- standardized spot means + per-state likelihood sums (O(N*S) glue) ---
    sm = (mean_vec - jnp.mean(mean_vec)) / (jnp.std(mean_vec) + 1e-8)
    state_means = mean_vec[:num_states]        # faithful: uses raw means of spots 0..S-1
    like_sum = jnp.sum(jnp.exp(-0.5 * (sm[None, :] - state_means[:, None]) ** 2), axis=1)

    # --- vectorized Metropolis-Hastings state sweep (on device) ---
    # TODO(synk): original uses the unseeded global np.random state and a serial per-spot
    # loop; here the sweep is vectorized over spots with a seeded jax.random stream.
    prior = jnp.array([0.1, 0.8, 0.1], jnp.float32)
    trans = jnp.array([[0.98, 0.01, 0.01],
                       [0.01, 0.98, 0.01],
                       [0.01, 0.01, 0.98]], jnp.float32)
    k_init, k_loop = jax.random.split(key)
    states0 = jax.random.randint(k_init, (n,), 0, num_states)
    probs0 = jnp.zeros((n, num_states), jnp.float32)

    def mh_body(it, carry):
        states, probs = carry
        kc, ku = jax.random.split(jax.random.fold_in(k_loop, it))
        cand = jax.random.randint(kc, (n,), 0, num_states)
        u = jax.random.uniform(ku, (n,), jnp.float32)
        accept_p = ((prior[cand] / prior[states])
                    * (like_sum[cand] / like_sum[states])
                    * (trans[states, cand] / trans[cand, states]))
        states = jnp.where(u < accept_p, cand, states)
        probs = probs + jax.nn.one_hot(states, num_states, dtype=jnp.float32)
        return states, probs

    _, state_probs = jax.lax.fori_loop(0, max_iters, mh_body, (states0, probs0))

    # --- graph smoothing: scatter_mean(state_probs[row], col, dim=0) ---
    gathered = state_probs[row]                                        # (E, S)
    seg_sum = jax.ops.segment_sum(gathered, col, num_segments=n)
    counts = jax.ops.segment_sum(jnp.ones(col.shape, jnp.float32), col, num_segments=n)
    smoothed = seg_sum / jnp.maximum(counts, 1.0)[:, None]
    final_states = jnp.argmax(smoothed, axis=1)
    s = (final_states + 1).astype(jnp.float32)                         # (N,) in {1..S}

    # --- tiny scalar epilogue on (N,)-vectors (exact nc statistics, no N*D pass) ---
    # nc[i,j] = r[i,j]*s_i / (s_i*sum_r_i + 1e-8) * sum_x_i = r[i,j] * k_i
    k_row = s * sum_x / (s * sum_r + 1e-8)
    cand_a = k_row * min_r
    cand_b = k_row * max_r
    mn = jnp.min(jnp.minimum(cand_a, cand_b))                          # global min(nc)
    mx = jnp.max(jnp.maximum(cand_a, cand_b))                          # global max(nc)
    nc_sum = jnp.sum(k_row * sum_r)                                    # global sum(nc)

    rmin = mn * 0.8
    rmax = mx * 1.2
    a = (rmax - rmin) / (mx - mn + 1e-8)
    b = rmin - a * mn
    # mean(a*nc + b) = a*mean(nc) + b ;  (no epsilon, matching the PyTorch reference)
    mean_nc = a * (nc_sum / jnp.float32(n * d)) + b
    scale = a / mean_nc
    offset = b / mean_nc

    rowcoef = (k_row * scale).reshape(-1, 1).astype(jnp.float32)       # (N, 1)
    offset_arr = jnp.reshape(offset, (1,)).astype(jnp.float32)         # SMEM scalar

    # --- final streaming pass (Pallas): norm_copy = r * rowcoef + offset ---
    norm_copy = apply_affine(offset_arr, rowcoef, recon, tile_rows)

    reg_loss = jnp.sum(ssq) * jnp.float32(1e-4)
    return norm_copy, reg_loss


# ------------------------------ module wrapper ------------------------------

class CNEncoder:
    """JAX/Pallas re-implementation of the PyTorch CNEncoder forward pass."""

    def __init__(self, original_dim, num_states=3, max_iters=20, seed=0, tile_rows=None):
        self.original_dim = original_dim
        self.num_states = num_states            # prior / transition hardcoded for 3 states,
        self.max_iters = max_iters              # exactly like the reference module
        self.seed = seed
        self.tile_rows = tile_rows
        self._call_count = 0

    def __call__(self, inputs, edge_index):
        norm_x, recon = inputs
        norm_x = jnp.asarray(norm_x)             # f32 or bf16 accepted; kernels upcast
        recon = jnp.asarray(recon)
        row, col = edge_index
        row = jnp.asarray(row, jnp.int32)
        col = jnp.asarray(col, jnp.int32)

        n, d = recon.shape
        tile = self.tile_rows if self.tile_rows is not None else _auto_tile_rows(n, d)
        tile = _sanitize_tile(tile, n)

        key = jax.random.fold_in(jax.random.PRNGKey(self.seed), self._call_count)
        self._call_count += 1

        return _cnencoder_forward(
            norm_x, recon, row, col, key,
            num_states=self.num_states, max_iters=self.max_iters, tile_rows=tile)


# ----------------------------------- main -----------------------------------

if __name__ == "__main__":
    key = jax.random.PRNGKey(0)
    N, D = 320, 256   # num_spots x original_dim; tile_rows=128 -> 3 row tiles (last partial)

    k1, k2 = jax.random.split(key)
    norm_x = jax.random.uniform(k1, (N, D), dtype=jnp.float32)
    reconstructed = jax.random.uniform(k2, (N, D), dtype=jnp.float32) + 0.1

    # bidirectional ring graph so every node receives at least one message
    src = jnp.arange(N, dtype=jnp.int32)
    dst = (src + 1) % N
    edge_index = (jnp.concatenate([src, dst]), jnp.concatenate([dst, src]))

    encoder = CNEncoder(original_dim=D, num_states=3, max_iters=20, seed=0, tile_rows=128)
    norm_copy, reg_loss = encoder((norm_x, reconstructed), edge_index)
    jax.block_until_ready((norm_copy, reg_loss))

    assert norm_copy.shape == (N, D)
    assert norm_copy.dtype == jnp.float32
    assert reg_loss.shape == ()
    assert bool(jnp.isfinite(norm_copy).all())
    assert bool(jnp.isfinite(reg_loss))

    # sanity: output mean should be ~1 after the mean-normalization step
    assert bool(jnp.abs(jnp.mean(norm_copy) - 1.0) < 1e-3)
    print("KERNEL_OK")
</pallas_src>

<mosaic_0001>
module attributes {stable_mosaic.version = 11 : i64} {
  func.func private @main(%arg0: i32) attributes {dimension_semantics = [#tpu.dimension_semantics<core_parallel>], iteration_bounds = array<i64: 2>, tpu.core_type = #tpu.core_type<sc_scalar_subcore>, window_params = []} {
    return
  }
}

module attributes {stable_mosaic.version = 11 : i64} {
  func.func private @main(%arg0: i32) attributes {dimension_semantics = [#tpu.dimension_semantics<core_parallel>], iteration_bounds = array<i64: 2>, tpu.core_type = #tpu.core_type<sc_scalar_subcore>, window_params = []} {
    return
  }
}

module attributes {stable_mosaic.version = 11 : i64} {
  func.func @_rowstats_kernel(%arg0: i32, %arg1: memref<128x256xf32, #tpu.memory_space<vmem>>, %arg2: memref<128x256xf32, #tpu.memory_space<vmem>>, %arg3: memref<128x1xf32, #tpu.memory_space<vmem>>, %arg4: memref<128x1xf32, #tpu.memory_space<vmem>>, %arg5: memref<128x1xf32, #tpu.memory_space<vmem>>, %arg6: memref<128x1xf32, #tpu.memory_space<vmem>>, %arg7: memref<128x1xf32, #tpu.memory_space<vmem>>) attributes {dimension_semantics = [#tpu.dimension_semantics<parallel>], iteration_bounds = array<i64: 3>, scalar_prefetch = 0 : i64, scratch_operands = 0 : i64, tpu.core_type = #tpu.core_type<tc>, window_params = [{transform_indices = @transform_0, window_bounds = array<i64: 128, 256>}, {transform_indices = @transform_1, window_bounds = array<i64: 128, 256>}, {transform_indices = @transform_2, window_bounds = array<i64: 128, 1>}, {transform_indices = @transform_3, window_bounds = array<i64: 128, 1>}, {transform_indices = @transform_4, window_bounds = array<i64: 128, 1>}, {transform_indices = @transform_5, window_bounds = array<i64: 128, 1>}, {transform_indices = @transform_6, window_bounds = array<i64: 128, 1>}]} {
    %c0 = arith.constant 0 : index
    %c0_0 = arith.constant 0 : index
    %0 = vector.load %arg1[%c0, %c0_0] : memref<128x256xf32, #tpu.memory_space<vmem>>, vector<128x256xf32>
    %c0_1 = arith.constant 0 : index
    %c0_2 = arith.constant 0 : index
    %1 = vector.load %arg2[%c0_1, %c0_2] : memref<128x256xf32, #tpu.memory_space<vmem>>, vector<128x256xf32>
    %cst = arith.constant dense<0.000000e+00> : vector<128xf32>
    %2 = vector.multi_reduction <add>, %0, %cst [1] : vector<128x256xf32> to vector<128xf32>
    %3 = vector.shape_cast %2 : vector<128xf32> to vector<128x1xf32>
    %c0_3 = arith.constant 0 : index
    %c0_4 = arith.constant 0 : index
    %4 = vector.load %arg3[%c0_3, %c0_4] : memref<128x1xf32, #tpu.memory_space<vmem>>, vector<128x1xf32>
    tpu.vector_store %arg3[%c0_3, %c0_4], %3 {strides = array<i32>} : memref<128x1xf32, #tpu.memory_space<vmem>>, vector<128x1xf32>,
    %cst_5 = arith.constant dense<0.000000e+00> : vector<128xf32>
    %5 = vector.multi_reduction <add>, %1, %cst_5 [1] : vector<128x256xf32> to vector<128xf32>
    %6 = vector.shape_cast %5 : vector<128xf32> to vector<128x1xf32>
    %c0_6 = arith.constant 0 : index
    %c0_7 = arith.constant 0 : index
    %7 = vector.load %arg4[%c0_6, %c0_7] : memref<128x1xf32, #tpu.memory_space<vmem>>, vector<128x1xf32>
    tpu.vector_store %arg4[%c0_6, %c0_7], %6 {strides = array<i32>} : memref<128x1xf32, #tpu.memory_space<vmem>>, vector<128x1xf32>,
    %cst_8 = arith.constant dense<0x7F800000> : vector<128xf32>
    %8 = vector.multi_reduction <minimumf>, %0, %cst_8 [1] : vector<128x256xf32> to vector<128xf32>
    %9 = vector.shape_cast %8 : vector<128xf32> to vector<128x1xf32>
    %c0_9 = arith.constant 0 : index
    %c0_10 = arith.constant 0 : index
    %10 = vector.load %arg5[%c0_9, %c0_10] : memref<128x1xf32, #tpu.memory_space<vmem>>, vector<128x1xf32>
    tpu.vector_store %arg5[%c0_9, %c0_10], %9 {strides = array<i32>} : memref<128x1xf32, #tpu.memory_space<vmem>>, vector<128x1xf32>,
    %cst_11 = arith.constant dense<0xFF800000> : vector<128xf32>
    %11 = vector.multi_reduction <maximumf>, %0, %cst_11 [1] : vector<128x256xf32> to vector<128xf32>
    %12 = vector.shape_cast %11 : vector<128xf32> to vector<128x1xf32>
    %c0_12 = arith.constant 0 : index
    %c0_13 = arith.constant 0 : index
    %13 = vector.load %arg6[%c0_12, %c0_13] : memref<128x1xf32, #tpu.memory_space<vmem>>, vector<128x1xf32>
    tpu.vector_store %arg6[%c0_12, %c0_13], %12 {strides = array<i32>} : memref<128x1xf32, #tpu.memory_space<vmem>>, vector<128x1xf32>,
    %14 = arith.mulf %0, %0 : vector<128x256xf32>
    %cst_14 = arith.constant dense<0.000000e+00> : vector<128xf32>
    %15 = vector.multi_reduction <add>, %14, %cst_14 [1] : vector<128x256xf32> to vector<128xf32>
    %16 = vector.shape_cast %15 : vector<128xf32> to vector<128x1xf32>
    %c0_15 = arith.constant 0 : index
    %c0_16 = arith.constant 0 : index
    %17 = vector.load %arg7[%c0_15, %c0_16] : memref<128x1xf32, #tpu.memory_space<vmem>>, vector<128x1xf32>
    tpu.vector_store %arg7[%c0_15, %c0_16], %16 {strides = array<i32>} : memref<128x1xf32, #tpu.memory_space<vmem>>, vector<128x1xf32>,
    return
  }
  func.func @transform_0(%arg0: i32) -> (i32, i32) {
    %c0_i32 = arith.constant 0 : i32
    %c0_i32_0 = arith.constant 0 : i32
    return %arg0, %c0_i32 : i32, i32
  }
  func.func @transform_1(%arg0: i32) -> (i32, i32) {
    %c0_i32 = arith.constant 0 : i32
    %c0_i32_0 = arith.constant 0 : i32
    return %arg0, %c0_i32 : i32, i32
  }
  func.func @transform_2(%arg0: i32) -> (i32, i32) {
    %c0_i32 = arith.constant 0 : i32
    %c0_i32_0 = arith.constant 0 : i32
    return %arg0, %c0_i32 : i32, i32
  }
  func.func @transform_3(%arg0: i32) -> (i32, i32) {
    %c0_i32 = arith.constant 0 : i32
    %c0_i32_0 = arith.constant 0 : i32
    return %arg0, %c0_i32 : i32, i32
  }
  func.func @transform_4(%arg0: i32) -> (i32, i32) {
    %c0_i32 = arith.constant 0 : i32
    %c0_i32_0 = arith.constant 0 : i32
    return %arg0, %c0_i32 : i32, i32
  }
  func.func @transform_5(%arg0: i32) -> (i32, i32) {
    %c0_i32 = arith.constant 0 : i32
    %c0_i32_0 = arith.constant 0 : i32
    return %arg0, %c0_i32 : i32, i32
  }
  func.func @transform_6(%arg0: i32) -> (i32, i32) {
    %c0_i32 = arith.constant 0 : i32
    %c0_i32_0 = arith.constant 0 : i32
    return %arg0, %c0_i32 : i32, i32
  }
}

module attributes {stable_mosaic.version = 11 : i64} {
  func.func @_affine_kernel(%arg0: i32, %arg1: memref<1xf32, #tpu.memory_space<smem>>, %arg2: memref<128x1xf32, #tpu.memory_space<vmem>>, %arg3: memref<128x256xf32, #tpu.memory_space<vmem>>, %arg4: memref<128x256xf32, #tpu.memory_space<vmem>>) attributes {dimension_semantics = [#tpu.dimension_semantics<parallel>], iteration_bounds = array<i64: 3>, scalar_prefetch = 0 : i64, scratch_operands = 0 : i64, tpu.core_type = #tpu.core_type<tc>, window_params = [{transform_indices = @transform_0, window_bounds = array<i64: 1>}, {transform_indices = @transform_1, window_bounds = array<i64: 128, 1>}, {transform_indices = @transform_2, window_bounds = array<i64: 128, 256>}, {transform_indices = @transform_3, window_bounds = array<i64: 128, 256>}]} {
    %c0 = arith.constant 0 : index
    %c0_0 = arith.constant 0 : index
    %0 = vector.load %arg3[%c0, %c0_0] : memref<128x256xf32, #tpu.memory_space<vmem>>, vector<128x256xf32>
    %c0_1 = arith.constant 0 : index
    %c0_2 = arith.constant 0 : index
    %1 = vector.load %arg2[%c0_1, %c0_2] : memref<128x1xf32, #tpu.memory_space<vmem>>, vector<128x1xf32>
    %2 = vector.broadcast %1 : vector<128x1xf32> to vector<128x256xf32>
    %3 = arith.mulf %0, %2 : vector<128x256xf32>
    %c0_3 = arith.constant 0 : index
    %4 = memref.load %arg1[%c0_3] : memref<1xf32, #tpu.memory_space<smem>>
    %5 = vector.broadcast %4 : f32 to vector<128x256xf32>
    %6 = arith.addf %3, %5 : vector<128x256xf32>
    %c0_4 = arith.constant 0 : index
    %c0_5 = arith.constant 0 : index
    %7 = vector.load %arg4[%c0_4, %c0_5] : memref<128x256xf32, #tpu.memory_space<vmem>>, vector<128x256xf32>
    tpu.vector_store %arg4[%c0_4, %c0_5], %6 {strides = array<i32>} : memref<128x256xf32, #tpu.memory_space<vmem>>, vector<128x256xf32>,
    return
  }
  func.func @transform_0(%arg0: i32) -> i32 {
    %c0_i32 = arith.constant 0 : i32
    %c0_i32_0 = arith.constant 0 : i32
    return %c0_i32 : i32
  }
  func.func @transform_1(%arg0: i32) -> (i32, i32) {
    %c0_i32 = arith.constant 0 : i32
    %c0_i32_0 = arith.constant 0 : i32
    return %arg0, %c0_i32 : i32, i32
  }
  func.func @transform_2(%arg0: i32) -> (i32, i32) {
    %c0_i32 = arith.constant 0 : i32
    %c0_i32_0 = arith.constant 0 : i32
    return %arg0, %c0_i32 : i32, i32
  }
  func.func @transform_3(%arg0: i32) -> (i32, i32) {
    %c0_i32 = arith.constant 0 : i32
    %c0_i32_0 = arith.constant 0 : i32
    return %arg0, %c0_i32 : i32, i32
  }
}

</mosaic_0001>

<llo_original>
// kernel: custom-call.4
$region0: #{custom-call.4}
  %s0 = inlined_call_operand.vmem [shape: f32[320,3], index: 0, kind: output, shape index: {}]

// kernel: _cnencoder_forward.2
$region0: #{_cnencoder_forward.2}
  #allocation0 [shape = 'u32[]', space=smem, size = 0x4, offset = 0x4, fixed_abs, tag = 'smem constant byte address 0x4 - core index']
  #allocation1 [shape = 'u32[144,128]{1,0:T(1,128)}', space=vmem, size = 0x12000, scoped, tag = 'internal scratch']
  %s0 = inlined_call_operand.hbm [shape: f32[320,256], index: 0, kind: input, shape index: {}]
  %s1 = inlined_call_operand.hbm [shape: f32[320,256], index: 1, kind: input, shape index: {}]
  %s2 = inlined_call_operand.vmem [shape: f32[320,1], index: 2, kind: output, shape index: {0}]
  %s3 = inlined_call_operand.vmem [shape: f32[320,1], index: 3, kind: output, shape index: {1}]
  %s4 = inlined_call_operand.vmem [shape: f32[320,1], index: 4, kind: output, shape index: {2}]
  %s5 = inlined_call_operand.vmem [shape: f32[320,1], index: 5, kind: output, shape index: {3}]
  %s6 = inlined_call_operand.vmem [shape: f32[320,1], index: 6, kind: output, shape index: {4}]
  %7 = xla_tuple %s2, %s3, %s4, %s5, %s6
  %s8 = sld [smem:[#allocation0]]
  $region321: #{_cnencoder_forward.2} parent=0
    _
  %s10 = ssub.s32 1, %s8
  %s11 = scalar_select 0, %s10, %s8
  $region1: #{_cnencoder_forward.2} parent=0
    #allocation2 [shape = 'u8[262144]{0}', space=vmem, size = 0x40000, scoped, tag = 'input window, operand 0']
    #allocation3 [shape = 's32[2]{0}', space=sflag, size = 0x8, scoped, tag = 'scoped memory for _cnencoder_forward.2']
    #allocation4 [shape = 'u8[262144]{0}', space=vmem, size = 0x40000, scoped, tag = 'input window, operand 1']
    #allocation5 [shape = 's32[2]{0}', space=sflag, size = 0x8, scoped, tag = 'scoped memory for _cnencoder_forward.2']
    #allocation6 [shape = 'u8[131072]{0}', space=vmem, size = 0x20000, scoped, tag = 'output window, operand 0']
    #allocation7 [shape = 'u8[131072]{0}', space=vmem, size = 0x20000, scoped, tag = 'output window, operand 1']
    #allocation8 [shape = 'u8[131072]{0}', space=vmem, size = 0x20000, scoped, tag = 'output window, operand 2']
    #allocation9 [shape = 'u8[131072]{0}', space=vmem, size = 0x20000, scoped, tag = 'output window, operand 3']
    #allocation10 [shape = 'u8[131072]{0}', space=vmem, size = 0x20000, scoped, tag = 'output window, operand 4']
    %12 = vsyncpa [#allocation3], 0
    %s13 = scalar_lea.sflag [#allocation3], 1
    %14 = vsyncpa %s13, 0
    %15 = vsyncpa [#allocation5], 0
    %s16 = scalar_lea.sflag [#allocation5], 1
    %17 = vsyncpa %s16, 0
    loop: start=0, step=1, limit=5
    $region2: #{_cnencoder_forward.2} parent=1 // loop_pre_header
      _
    $region3: #{_cnencoder_forward.2} parent=1 // loop_header
      %s19 = sphi 0, %s23
      %p20 = scmp.ge.s32.totalorder %s19, 5
      %s29 = sphi 0, %s31
      %s32 = sphi 0, %s29
      %s33 = sphi 0, %s32
      %s49 = sphi 0, %s33
      %s55 = sphi 0, %s57
      %s58 = sphi 0, %s55
      %s59 = sphi 0, %s58
      %s75 = sphi 0, %s59
      %s81 = sphi 0, %s83
      %s84 = sphi 0, %s81
      %s85 = sphi 0, %s84
      %s101 = sphi 0, %s85
      %s107 = sphi 0, %s109
      %s110 = sphi 0, %s107
      %s111 = sphi 0, %s110
      %s127 = sphi 0, %s111
      %s133 = sphi 0, %s135
      %s136 = sphi 0, %s133
      %s137 = sphi 0, %s136
      %s153 = sphi 0, %s137
      %s159 = sphi 0, %s161
      %s162 = sphi 0, %s159
      %s163 = sphi 0, %s162
      %s179 = sphi 0, %s163
      %s185 = sphi 0, %s187
      %s188 = sphi 0, %s185
      %s189 = sphi 0, %s188
      %s205 = sphi 0, %s189
    $region4: #{_cnencoder_forward.2} parent=1 // loop_header_branch
      %22 = sbr.rel (%p20) target = $region8
    $region5: #{_cnencoder_forward.2} parent=1 // loop_body
      %s24 = ssub.s32 %s19, 1
      %s25 = ssub.s32 %s19, 2
      %s26 = sadd.s32 %s19, 1
      %s27 = ssub.s32 %s19, %s26
      %p28 = scmp.eq.s32.totalorder %s27, 0
      %s30 = sadd.s32 %s29, 1
      %s31 = scalar_select %p28, %s29, %s30
      %p34 = pneg %p28
      %p35 = scmp.eq.s32.totalorder %s19, 2
      %p36 = por %p34, %p35
      %p37 = scmp.ne.s32.totalorder %s29, %s32
      %p38 = scmp.eq.s32.totalorder %s19, 0
      %p39 = por %p37, %p38
      %p40 = scmp.ne.s32.totalorder %s29, %s32
      %p41 = scmp.eq.s32.totalorder %s24, 2
      %p42 = por %p40, %p41
      %p43 = scmp.ne.s32.totalorder %s32, %s33
      %p44 = scmp.eq.s32.totalorder %s24, 0
      %p45 = por %p43, %p44
      %p46 = scmp.ne.s32.totalorder %s32, %s33
      %p47 = scmp.eq.s32.totalorder %s25, 2
      %p48 = por %p46, %p47
      %p50 = scmp.ne.s32.totalorder %s33, %s49
      %p51 = scmp.eq.s32.totalorder %s25, 0
      %p52 = por %p50, %p51
      %s53 = ssub.s32 %s19, %s26
      %p54 = scmp.eq.s32.totalorder %s53, 0
      %s56 = sadd.s32 %s55, 1
      %s57 = scalar_select %p54, %s55, %s56
      %p60 = pneg %p54
      %p61 = scmp.eq.s32.totalorder %s19, 2
      %p62 = por %p60, %p61
      %p63 = scmp.ne.s32.totalorder %s55, %s58
      %p64 = scmp.eq.s32.totalorder %s19, 0
      %p65 = por %p63, %p64
      %p66 = scmp.ne.s32.totalorder %s55, %s58
      %p67 = scmp.eq.s32.totalorder %s24, 2
      %p68 = por %p66, %p67
      %p69 = scmp.ne.s32.totalorder %s58, %s59
      %p70 = scmp.eq.s32.totalorder %s24, 0
      %p71 = por %p69, %p70
      %p72 = scmp.ne.s32.totalorder %s58, %s59
      %p73 = scmp.eq.s32.totalorder %s25, 2
      %p74 = por %p72, %p73
      %p76 = scmp.ne.s32.totalorder %s59, %s75
      %p77 = scmp.eq.s32.totalorder %s25, 0
      %p78 = por %p76, %p77
      %s79 = ssub.s32 %s19, %s26
      %p80 = scmp.eq.s32.totalorder %s79, 0
      %s82 = sadd.s32 %s81, 1
      %s83 = scalar_select %p80, %s81, %s82
      %p86 = pneg %p80
      %p87 = scmp.eq.s32.totalorder %s19, 2
      %p88 = por %p86, %p87
      %p89 = scmp.ne.s32.totalorder %s81, %s84
      %p90 = scmp.eq.s32.totalorder %s19, 0
      %p91 = por %p89, %p90
      %p92 = scmp.ne.s32.totalorder %s81, %s84
      %p93 = scmp.eq.s32.totalorder %s24, 2
      %p94 = por %p92, %p93
      %p95 = scmp.ne.s32.totalorder %s84, %s85
      %p96 = scmp.eq.s32.totalorder %s24, 0
      %p97 = por %p95, %p96
      %p98 = scmp.ne.s32.totalorder %s84, %s85
      %p99 = scmp.eq.s32.totalorder %s25, 2
      %p100 = por %p98, %p99
      %p102 = scmp.ne.s32.totalorder %s85, %s101
      %p103 = scmp.eq.s32.totalorder %s25, 0
      %p104 = por %p102, %p103
      %s105 = ssub.s32 %s19, %s26
      %p106 = scmp.eq.s32.totalorder %s105, 0
      %s108 = sadd.s32 %s107, 1
      %s109 = scalar_select %p106, %s107, %s108
      %p112 = pneg %p106
      %p113 = scmp.eq.s32.totalorder %s19, 2
      %p114 = por %p112, %p113
      %p115 = scmp.ne.s32.totalorder %s107, %s110
      %p116 = scmp.eq.s32.totalorder %s19, 0
      %p117 = por %p115, %p116
      %p118 = scmp.ne.s32.totalorder %s107, %s110
      %p119 = scmp.eq.s32.totalorder %s24, 2
      %p120 = por %p118, %p119
      %p121 = scmp.ne.s32.totalorder %s110, %s111
      %p122 = scmp.eq.s32.totalorder %s24, 0
      %p123 = por %p121, %p122
      %p124 = scmp.ne.s32.totalorder %s110, %s111
      %p125 = scmp.eq.s32.totalorder %s25, 2
      %p126 = por %p124, %p125
      %p128 = scmp.ne.s32.totalorder %s111, %s127
      %p129 = scmp.eq.s32.totalorder %s25, 0
      %p130 = por %p128, %p129
      %s131 = ssub.s32 %s19, %s26
      %p132 = scmp.eq.s32.totalorder %s131, 0
      %s134 = sadd.s32 %s133, 1
      %s135 = scalar_select %p132, %s133, %s134
      %p138 = pneg %p132
      %p139 = scmp.eq.s32.totalorder %s19, 2
      %p140 = por %p138, %p139
      %p141 = scmp.ne.s32.totalorder %s133, %s136
      %p142 = scmp.eq.s32.totalorder %s19, 0
      %p143 = por %p141, %p142
      %p144 = scmp.ne.s32.totalorder %s133, %s136
      %p145 = scmp.eq.s32.totalorder %s24, 2
      %p146 = por %p144, %p145
      %p147 = scmp.ne.s32.totalorder %s136, %s137
      %p148 = scmp.eq.s32.totalorder %s24, 0
      %p149 = por %p147, %p148
      %p150 = scmp.ne.s32.totalorder %s136, %s137
      %p151 = scmp.eq.s32.totalorder %s25, 2
      %p152 = por %p150, %p151
      %p154 = scmp.ne.s32.totalorder %s137, %s153
      %p155 = scmp.eq.s32.totalorder %s25, 0
      %p156 = por %p154, %p155
      %s157 = ssub.s32 %s19, %s26
      %p158 = scmp.eq.s32.totalorder %s157, 0
      %s160 = sadd.s32 %s159, 1
      %s161 = scalar_select %p158, %s159, %s160
      %p164 = pneg %p158
      %p165 = scmp.eq.s32.totalorder %s19, 2
      %p166 = por %p164, %p165
      %p167 = scmp.ne.s32.totalorder %s159, %s162
      %p168 = scmp.eq.s32.totalorder %s19, 0
      %p169 = por %p167, %p168
      %p170 = scmp.ne.s32.totalorder %s159, %s162
      %p171 = scmp.eq.s32.totalorder %s24, 2
      %p172 = por %p170, %p171
      %p173 = scmp.ne.s32.totalorder %s162, %s163
      %p174 = scmp.eq.s32.totalorder %s24, 0
      %p175 = por %p173, %p174
      %p176 = scmp.ne.s32.totalorder %s162, %s163
      %p177 = scmp.eq.s32.totalorder %s25, 2
      %p178 = por %p176, %p177
      %p180 = scmp.ne.s32.totalorder %s163, %s179
      %p181 = scmp.eq.s32.totalorder %s25, 0
      %p182 = por %p180, %p181
      %s183 = ssub.s32 %s19, %s26
      %p184 = scmp.eq.s32.totalorder %s183, 0
      %s186 = sadd.s32 %s185, 1
      %s187 = scalar_select %p184, %s185, %s186
      %p190 = pneg %p184
      %p191 = scmp.eq.s32.totalorder %s19, 2
      %p192 = por %p190, %p191
      %p193 = scmp.ne.s32.totalorder %s185, %s188
      %p194 = scmp.eq.s32.totalorder %s19, 0
      %p195 = por %p193, %p194
      %p196 = scmp.ne.s32.totalorder %s185, %s188
      %p197 = scmp.eq.s32.totalorder %s24, 2
      %p198 = por %p196, %p197
      %p199 = scmp.ne.s32.totalorder %s188, %s189
      %p200 = scmp.eq.s32.totalorder %s24, 0
      %p201 = por %p199, %p200
      %p202 = scmp.ne.s32.totalorder %s188, %s189
      %p203 = scmp.eq.s32.totalorder %s25, 2
      %p204 = por %p202, %p203
      %p206 = scmp.ne.s32.totalorder %s189, %s205
      %p207 = scmp.eq.s32.totalorder %s25, 0
      %p208 = por %p206, %p207
      %p209 = scmp.le.s32.totalorder 1, %s19
      %p210 = scmp.lt.s32.totalorder %s19, 4
      %p211 = pnand %p209, %p210
      %p212 = pneg %p211
      // Predicated region
      $region9: #{_cnencoder_forward.2} parent=5 // pred_check
        _
      $region10: #{_cnencoder_forward.2} parent=5 // pred_check_branch
        %214 = sbr.rel (%p211) target = $region12
      $region11: #{_cnencoder_forward.2} parent=5 // pred_region
        %s215 = ssub.s32 %s19, 1
      $region12: #{_cnencoder_forward.2} parent=5 // pred_fallthru
        _
      %p216 = scmp.lt.s32.totalorder %s19, 3
      // Predicated region
      $region13: #{_cnencoder_forward.2} parent=5 // pred_check
        %p217 = pneg %p216
      $region14: #{_cnencoder_forward.2} parent=5 // pred_check_branch
        %219 = sbr.rel (%p217) target = $region16
      $region15: #{_cnencoder_forward.2} parent=5 // pred_region
        // Predicated region
        $region17: #{_cnencoder_forward.2} parent=15 // pred_check
          %p220 = pneg %p39
        $region18: #{_cnencoder_forward.2} parent=15 // pred_check_branch
          %222 = sbr.rel (%p220) target = $region20
        $region19: #{_cnencoder_forward.2} parent=15 // pred_region
          %s223 = sand.u32 %s29, 1
          %s224 = scalar_lea.sflag [#allocation3], %s223
          %s225 = sand.u32 %s29, 1
          %s226 = smul.addr %s225, 256
          %s227 = scalar_lea.vmem [#allocation2], %s226
          %s228 = smul.u32 16, %s19
          %s229 = ssub.s32 40, %s228
          %p230 = scmp.lt.s32.totalorder %s229, 16
          %s231 = scalar_select %p230, %s229, 16
          %s232 = smul.u32 128, %s231
          %s233 = smul.u32 %s232, 2
          %s235 = ssub.s32 4096, %s233
          %236 = vsyncadd %s224, %s235
          %p237 = scmp.ne.s32.totalorder 0, %s233
          %s238 = smul.addr %s228, 2
          %s239 = smul.addr %s238, 128
          %s240 = scalar_lea.hbm %s0, %s239
          %s241 = smul.u32 16, %s231
          %s242 = sshll.u32 %s227, 4
          %s243 = int_to_ptr.vmem [resolvable:$true] %s242
          %s244 = sshll.u32 %s241, 4
          %248 = dma.hbm_to_vmem [thread:$0]  (%p237), %s240, %s244, %s243, %s224, 256, 256, 16
        $region20: #{_cnencoder_forward.2} parent=15 // pred_fallthru
          _
        // Predicated region
        $region21: #{_cnencoder_forward.2} parent=15 // pred_check
          %p249 = pneg %p65
        $region22: #{_cnencoder_forward.2} parent=15 // pred_check_branch
          %251 = sbr.rel (%p249) target = $region24
        $region23: #{_cnencoder_forward.2} parent=15 // pred_region
          %s252 = sand.u32 %s55, 1
          %s253 = scalar_lea.sflag [#allocation5], %s252
          %s254 = sand.u32 %s55, 1
          %s255 = smul.addr %s254, 256
          %s256 = scalar_lea.vmem [#allocation4], %s255
          %s257 = smul.u32 16, %s19
          %s258 = ssub.s32 40, %s257
          %p259 = scmp.lt.s32.totalorder %s258, 16
          %s260 = scalar_select %p259, %s258, 16
          %s261 = smul.u32 128, %s260
          %s262 = smul.u32 %s261, 2
          %s264 = ssub.s32 4096, %s262
          %265 = vsyncadd %s253, %s264
          %p266 = scmp.ne.s32.totalorder 0, %s262
          %s267 = smul.addr %s257, 2
          %s268 = smul.addr %s267, 128
          %s269 = scalar_lea.hbm %s1, %s268
          %s270 = smul.u32 16, %s260
          %s271 = sshll.u32 %s256, 4
          %s272 = int_to_ptr.vmem [resolvable:$true] %s271
          %s273 = sshll.u32 %s270, 4
          %277 = dma.hbm_to_vmem [thread:$0]  (%p266), %s269, %s273, %s272, %s253, 256, 256, 16
        $region24: #{_cnencoder_forward.2} parent=15 // pred_fallthru
          _
      $region16: #{_cnencoder_forward.2} parent=5 // pred_fallthru
        _
      %p278 = scmp.le.s32.totalorder 1, %s19
      %p279 = scmp.lt.s32.totalorder %s19, 4
      %p280 = pnand %p278, %p279
      %p281 = pneg %p280
      // Predicated region
      $region25: #{_cnencoder_forward.2} parent=5 // pred_check
        _
      $region26: #{_cnencoder_forward.2} parent=5 // pred_check_branch
        %283 = sbr.rel (%p280) target = $region28
      $region27: #{_cnencoder_forward.2} parent=5 // pred_region
        %s284 = ssub.s32 %s19, 1
        %s285 = sand.u32 %s32, 1
        %s286 = scalar_lea.sflag [#allocation3], %s285
        %s287 = sand.u32 %s32, 1
        %s288 = smul.addr %s287, 256
        %s289 = scalar_lea.vmem [#allocation2], %s288
        // Predicated region
        $region29: #{_cnencoder_forward.2} parent=27 // pred_check
          %p290 = pneg %p45
        $region30: #{_cnencoder_forward.2} parent=27 // pred_check_branch
          %292 = sbr.rel (%p290) target = $region32
        $region31: #{_cnencoder_forward.2} parent=27 // pred_region
          %293 = dma.done %s286, 4096
        $region32: #{_cnencoder_forward.2} parent=27 // pred_fallthru
          _
        %s294 = sand.u32 %s58, 1
        %s295 = scalar_lea.sflag [#allocation5], %s294
        %s296 = sand.u32 %s58, 1
        %s297 = smul.addr %s296, 256
        %s298 = scalar_lea.vmem [#allocation4], %s297
        // Predicated region
        $region33: #{_cnencoder_forward.2} parent=27 // pred_check
          %p299 = pneg %p71
        $region34: #{_cnencoder_forward.2} parent=27 // pred_check_branch
          %301 = sbr.rel (%p299) target = $region36
        $region35: #{_cnencoder_forward.2} parent=27 // pred_region
          %302 = dma.done %s295, 4096
        $region36: #{_cnencoder_forward.2} parent=27 // pred_fallthru
          _
        %s303 = sand.u32 %s32, 1
        %s304 = scalar_lea.sflag [#allocation3], %s303
        %s305 = sand.u32 %s32, 1
        %s306 = smul.addr %s305, 256
        %s307 = scalar_lea.vmem [#allocation2], %s306
        %p308 = pneg %p45
        %p309 = pneg %p42
        %s310 = sand.u32 %s58, 1
        %s311 = scalar_lea.sflag [#allocation5], %s310
        %s312 = sand.u32 %s58, 1
        %s313 = smul.addr %s312, 256
        %s314 = scalar_lea.vmem [#allocation4], %s313
        %p315 = pneg %p71
        %p316 = pneg %p68
        %p317 = pneg %p97
        %p318 = pneg %p94
        %s319 = sand.u32 %s84, 1
        %s320 = sand.u32 %s84, 1
        %s321 = smul.addr %s320, 128
        %s322 = scalar_lea.vmem [#allocation6], %s321
        %p323 = pneg %p123
        %p324 = pneg %p120
        %s325 = sand.u32 %s110, 1
        %s326 = sand.u32 %s110, 1
        %s327 = smul.addr %s326, 128
        %s328 = scalar_lea.vmem [#allocation7], %s327
        %p329 = pneg %p149
        %p330 = pneg %p146
        %s331 = sand.u32 %s136, 1
        %s332 = sand.u32 %s136, 1
        %s333 = smul.addr %s332, 128
        %s334 = scalar_lea.vmem [#allocation8], %s333
        %p335 = pneg %p175
        %p336 = pneg %p172
        %s337 = sand.u32 %s162, 1
        %s338 = sand.u32 %s162, 1
        %s339 = smul.addr %s338, 128
        %s340 = scalar_lea.vmem [#allocation9], %s339
        %p341 = pneg %p201
        %p342 = pneg %p198
        %s343 = sand.u32 %s188, 1
        %s344 = sand.u32 %s188, 1
        %s345 = smul.addr %s344, 128
        %s346 = scalar_lea.vmem [#allocation10], %s345
        %s347 = smul.u32 16, %s24
        %s348 = ssub.s32 40, %s347
        %p349 = scmp.lt.s32.totalorder %s348, 16
        %s350 = scalar_select %p349, %s348, 16
        %s351 = smul.u32 128, %s350
        %s352 = smul.u32 %s351, 2
        %s353 = smul.u32 16, %s24
        %s354 = ssub.s32 40, %s353
        %p355 = scmp.lt.s32.totalorder %s354, 16
        %s356 = scalar_select %p355, %s354, 16
        %s357 = smul.u32 128, %s356
        %s358 = smul.u32 %s357, 2
        %s359 = smul.u32 16, %s24
        %s360 = ssub.s32 40, %s359
        %p361 = scmp.lt.s32.totalorder %s360, 16
        %s362 = scalar_select %p361, %s360, 16
        %s363 = smul.u32 128, %s362
        %s364 = smul.u32 16, %s24
        %s365 = ssub.s32 40, %s364
        %p366 = scmp.lt.s32.totalorder %s365, 16
        %s367 = scalar_select %p366, %s365, 16
        %s368 = smul.u32 128, %s367
        %s369 = smul.u32 16, %s24
        %s370 = ssub.s32 40, %s369
        %p371 = scmp.lt.s32.totalorder %s370, 16
        %s372 = scalar_select %p371, %s370, 16
        %s373 = smul.u32 128, %s372
        %s374 = smul.u32 16, %s24
        %s375 = ssub.s32 40, %s374
        %p376 = scmp.lt.s32.totalorder %s375, 16
        %s377 = scalar_select %p376, %s375, 16
        %s378 = smul.u32 128, %s377
        %s379 = smul.u32 16, %s24
        %s380 = ssub.s32 40, %s379
        %p381 = scmp.lt.s32.totalorder %s380, 16
        %s382 = scalar_select %p381, %s380, 16
        %s383 = smul.u32 128, %s382
        %v384 = vld [vmem:[%s289] sm:$0xff]
        %v385 = vld [vmem:[%s289 + $0x8] sm:$0xff]
        %v386 = vld [vmem:[%s289 + $0x10] sm:$0xff]
        %v387 = vld [vmem:[%s289 + $0x18] sm:$0xff]
        %v388 = vld [vmem:[%s289 + $0x20] sm:$0xff]
        %v389 = vld [vmem:[%s289 + $0x28] sm:$0xff]
        %v390 = vld [vmem:[%s289 + $0x30] sm:$0xff]
        %v391 = vld [vmem:[%s289 + $0x38] sm:$0xff]
        %v392 = vld [vmem:[%s289 + $0x40] sm:$0xff]
        %v393 = vld [vmem:[%s289 + $0x48] sm:$0xff]
        %v394 = vld [vmem:[%s289 + $0x50] sm:$0xff]
        %v395 = vld [vmem:[%s289 + $0x58] sm:$0xff]
        %v396 = vld [vmem:[%s289 + $0x60] sm:$0xff]
        %v397 = vld [vmem:[%s289 + $0x68] sm:$0xff]
        %v398 = vld [vmem:[%s289 + $0x70] sm:$0xff]
        %v399 = vld [vmem:[%s289 + $0x78] sm:$0xff]
        %v400 = vld [vmem:[%s289 + $0x80] sm:$0xff]
        %v401 = vld [vmem:[%s289 + $0x88] sm:$0xff]
        %v402 = vld [vmem:[%s289 + $0x90] sm:$0xff]
        %v403 = vld [vmem:[%s289 + $0x98] sm:$0xff]
        %v404 = vld [vmem:[%s289 + $0xa0] sm:$0xff]
        %v405 = vld [vmem:[%s289 + $0xa8] sm:$0xff]
        %v406 = vld [vmem:[%s289 + $0xb0] sm:$0xff]
        %v407 = vld [vmem:[%s289 + $0xb8] sm:$0xff]
        %v408 = vld [vmem:[%s289 + $0xc0] sm:$0xff]
        %v409 = vld [vmem:[%s289 + $0xc8] sm:$0xff]
        %v410 = vld [vmem:[%s289 + $0xd0] sm:$0xff]
        %v411 = vld [vmem:[%s289 + $0xd8] sm:$0xff]
        %v412 = vld [vmem:[%s289 + $0xe0] sm:$0xff]
        %v413 = vld [vmem:[%s289 + $0xe8] sm:$0xff]
        %v414 = vld [vmem:[%s289 + $0xf0] sm:$0xff]
        %v415 = vld [vmem:[%s289 + $0xf8] sm:$0xff]
        %v416 = vld [vmem:[%s298] sm:$0xff]
        %v417 = vld [vmem:[%s298 + $0x8] sm:$0xff]
        %v418 = vld [vmem:[%s298 + $0x10] sm:$0xff]
        %v419 = vld [vmem:[%s298 + $0x18] sm:$0xff]
        %v420 = vld [vmem:[%s298 + $0x20] sm:$0xff]
        %v421 = vld [vmem:[%s298 + $0x28] sm:$0xff]
        %v422 = vld [vmem:[%s298 + $0x30] sm:$0xff]
        %v423 = vld [vmem:[%s298 + $0x38] sm:$0xff]
        %v424 = vld [vmem:[%s298 + $0x40] sm:$0xff]
        %v425 = vld [vmem:[%s298 + $0x48] sm:$0xff]
        %v426 = vld [vmem:[%s298 + $0x50] sm:$0xff]
        %v427 = vld [vmem:[%s298 + $0x58] sm:$0xff]
        %v428 = vld [vmem:[%s298 + $0x60] sm:$0xff]
        %v429 = vld [vmem:[%s298 + $0x68] sm:$0xff]
        %v430 = vld [vmem:[%s298 + $0x70] sm:$0xff]
        %v431 = vld [vmem:[%s298 + $0x78] sm:$0xff]
        %v432 = vld [vmem:[%s298 + $0x80] sm:$0xff]
        %v433 = vld [vmem:[%s298 + $0x88] sm:$0xff]
        %v434 = vld [vmem:[%s298 + $0x90] sm:$0xff]
        %v435 = vld [vmem:[%s298 + $0x98] sm:$0xff]
        %v436 = vld [vmem:[%s298 + $0xa0] sm:$0xff]
        %v437 = vld [vmem:[%s298 + $0xa8] sm:$0xff]
        %v438 = vld [vmem:[%s298 + $0xb0] sm:$0xff]
        %v439 = vld [vmem:[%s298 + $0xb8] sm:$0xff]
        %v440 = vld [vmem:[%s298 + $0xc0] sm:$0xff]
        %v441 = vld [vmem:[%s298 + $0xc8] sm:$0xff]
        %v442 = vld [vmem:[%s298 + $0xd0] sm:$0xff]
        %v443 = vld [vmem:[%s298 + $0xd8] sm:$0xff]
        %v444 = vld [vmem:[%s298 + $0xe0] sm:$0xff]
        %v445 = vld [vmem:[%s298 + $0xe8] sm:$0xff]
        %v446 = vld [vmem:[%s298 + $0xf0] sm:$0xff]
        %v447 = vld [vmem:[%s298 + $0xf8] sm:$0xff]
        %v448 = vadd.f32 %v384, %v385
        %449 = vadd.xlane.f32.xlu0 %v448
        %v450 = vpop.xlane.xlu0 %449
        %v451 = vadd.f32 %v386, %v387
        %452 = vadd.xlane.f32.xlu0 %v451
        %v453 = vpop.xlane.xlu0 %452
        %v454 = vadd.f32 %v388, %v389
        %455 = vadd.xlane.f32.xlu0 %v454
        %v456 = vpop.xlane.xlu0 %455
        %v457 = vadd.f32 %v390, %v391
        %458 = vadd.xlane.f32.xlu0 %v457
        %v459 = vpop.xlane.xlu0 %458
        %v460 = vadd.f32 %v392, %v393
        %461 = vadd.xlane.f32.xlu0 %v460
        %v462 = vpop.xlane.xlu0 %461
        %v463 = vadd.f32 %v394, %v395
        %464 = vadd.xlane.f32.xlu0 %v463
        %v465 = vpop.xlane.xlu0 %464
        %v466 = vadd.f32 %v396, %v397
        %467 = vadd.xlane.f32.xlu0 %v466
        %v468 = vpop.xlane.xlu0 %467
        %v469 = vadd.f32 %v398, %v399
        %470 = vadd.xlane.f32.xlu0 %v469
        %v471 = vpop.xlane.xlu0 %470
        %v472 = vadd.f32 %v400, %v401
        %473 = vadd.xlane.f32.xlu0 %v472
        %v474 = vpop.xlane.xlu0 %473
        %v475 = vadd.f32 %v402, %v403
        %476 = vadd.xlane.f32.xlu0 %v475
        %v477 = vpop.xlane.xlu0 %476
        %v478 = vadd.f32 %v404, %v405
        %479 = vadd.xlane.f32.xlu0 %v478
        %v480 = vpop.xlane.xlu0 %479
        %v481 = vadd.f32 %v406, %v407
        %482 = vadd.xlane.f32.xlu0 %v481
        %v483 = vpop.xlane.xlu0 %482
        %v484 = vadd.f32 %v408, %v409
        %485 = vadd.xlane.f32.xlu0 %v484
        %v486 = vpop.xlane.xlu0 %485
        %v487 = vadd.f32 %v410, %v411
        %488 = vadd.xlane.f32.xlu0 %v487
        %v489 = vpop.xlane.xlu0 %488
        %v490 = vadd.f32 %v412, %v413
        %491 = vadd.xlane.f32.xlu0 %v490
        %v492 = vpop.xlane.xlu0 %491
        %v493 = vadd.f32 %v414, %v415
        %494 = vadd.xlane.f32.xlu0 %v493
        %v495 = vpop.xlane.xlu0 %494
        %vm496 = vcmask 7168
        %497 = vst.msk [vmem:[%s322] sm:$0xff] %vm496, %v450
        %498 = vst.msk [vmem:[%s322 + $0x8] sm:$0xff] %vm496, %v453
        %499 = vst.msk [vmem:[%s322 + $0x10] sm:$0xff] %vm496, %v456
        %500 = vst.msk [vmem:[%s322 + $0x18] sm:$0xff] %vm496, %v459
        %501 = vst.msk [vmem:[%s322 + $0x20] sm:$0xff] %vm496, %v462
        %502 = vst.msk [vmem:[%s322 + $0x28] sm:$0xff] %vm496, %v465
        %503 = vst.msk [vmem:[%s322 + $0x30] sm:$0xff] %vm496, %v468
        %504 = vst.msk [vmem:[%s322 + $0x38] sm:$0xff] %vm496, %v471
        %505 = vst.msk [vmem:[%s322 + $0x40] sm:$0xff] %vm496, %v474
        %506 = vst.msk [vmem:[%s322 + $0x48] sm:$0xff] %vm496, %v477
        %507 = vst.msk [vmem:[%s322 + $0x50] sm:$0xff] %vm496, %v480
        %508 = vst.msk [vmem:[%s322 + $0x58] sm:$0xff] %vm496, %v483
        %509 = vst.msk [vmem:[%s322 + $0x60] sm:$0xff] %vm496, %v486
        %510 = vst.msk [vmem:[%s322 + $0x68] sm:$0xff] %vm496, %v489
        %511 = vst.msk [vmem:[%s322 + $0x70] sm:$0xff] %vm496, %v492
        %512 = vst.msk [vmem:[%s322 + $0x78] sm:$0xff] %vm496, %v495
        %v513 = vadd.f32 %v416, %v417
        %514 = vadd.xlane.f32.xlu0 %v513
        %v515 = vpop.xlane.xlu0 %514
        %v516 = vadd.f32 %v418, %v419
        %517 = vadd.xlane.f32.xlu0 %v516
        %v518 = vpop.xlane.xlu0 %517
        %v519 = vadd.f32 %v420, %v421
        %520 = vadd.xlane.f32.xlu0 %v519
        %v521 = vpop.xlane.xlu0 %520
        %v522 = vadd.f32 %v422, %v423
        %523 = vadd.xlane.f32.xlu0 %v522
        %v524 = vpop.xlane.xlu0 %523
        %v525 = vadd.f32 %v424, %v425
        %526 = vadd.xlane.f32.xlu0 %v525
        %v527 = vpop.xlane.xlu0 %526
        %v528 = vadd.f32 %v426, %v427
        %529 = vadd.xlane.f32.xlu0 %v528
        %v530 = vpop.xlane.xlu0 %529
        %v531 = vadd.f32 %v428, %v429
        %532 = vadd.xlane.f32.xlu0 %v531
        %v533 = vpop.xlane.xlu0 %532
        %v534 = vadd.f32 %v430, %v431
        %535 = vadd.xlane.f32.xlu0 %v534
        %v536 = vpop.xlane.xlu0 %535
        %v537 = vadd.f32 %v432, %v433
        %538 = vadd.xlane.f32.xlu0 %v537
        %v539 = vpop.xlane.xlu0 %538
        %v540 = vadd.f32 %v434, %v435
        %541 = vadd.xlane.f32.xlu0 %v540
        %v542 = vpop.xlane.xlu0 %541
        %v543 = vadd.f32 %v436, %v437
        %544 = vadd.xlane.f32.xlu0 %v543
        %v545 = vpop.xlane.xlu0 %544
        %v546 = vadd.f32 %v438, %v439
        %547 = vadd.xlane.f32.xlu0 %v546
        %v548 = vpop.xlane.xlu0 %547
        %v549 = vadd.f32 %v440, %v441
        %550 = vadd.xlane.f32.xlu0 %v549
        %v551 = vpop.xlane.xlu0 %550
        %v552 = vadd.f32 %v442, %v443
        %553 = vadd.xlane.f32.xlu0 %v552
        %v554 = vpop.xlane.xlu0 %553
        %v555 = vadd.f32 %v444, %v445
        %556 = vadd.xlane.f32.xlu0 %v555
        %v557 = vpop.xlane.xlu0 %556
        %v558 = vadd.f32 %v446, %v447
        %559 = vadd.xlane.f32.xlu0 %v558
        %v560 = vpop.xlane.xlu0 %559
        %561 = vst.msk [vmem:[%s328] sm:$0xff] %vm496, %v515
        %562 = vst.msk [vmem:[%s328 + $0x8] sm:$0xff] %vm496, %v518
        %563 = vst.msk [vmem:[%s328 + $0x10] sm:$0xff] %vm496, %v521
        %564 = vst.msk [vmem:[%s328 + $0x18] sm:$0xff] %vm496, %v524
        %565 = vst.msk [vmem:[%s328 + $0x20] sm:$0xff] %vm496, %v527
        %566 = vst.msk [vmem:[%s328 + $0x28] sm:$0xff] %vm496, %v530
        %567 = vst.msk [vmem:[%s328 + $0x30] sm:$0xff] %vm496, %v533
        %568 = vst.msk [vmem:[%s328 + $0x38] sm:$0xff] %vm496, %v536
        %569 = vst.msk [vmem:[%s328 + $0x40] sm:$0xff] %vm496, %v539
        %570 = vst.msk [vmem:[%s328 + $0x48] sm:$0xff] %vm496, %v542
        %571 = vst.msk [vmem:[%s328 + $0x50] sm:$0xff] %vm496, %v545
        %572 = vst.msk [vmem:[%s328 + $0x58] sm:$0xff] %vm496, %v548
        %573 = vst.msk [vmem:[%s328 + $0x60] sm:$0xff] %vm496, %v551
        %574 = vst.msk [vmem:[%s328 + $0x68] sm:$0xff] %vm496, %v554
        %575 = vst.msk [vmem:[%s328 + $0x70] sm:$0xff] %vm496, %v557
        %576 = vst.msk [vmem:[%s328 + $0x78] sm:$0xff] %vm496, %v560
        %v577 = vmin.f32 %v384, %v385
        %578 = vmin.xlane.f32.xlu0 %v577
        %v579 = vpop.xlane.xlu0 %578
        %v580 = vmin.f32 %v386, %v387
        %581 = vmin.xlane.f32.xlu0 %v580
        %v582 = vpop.xlane.xlu0 %581
        %v583 = vmin.f32 %v388, %v389
        %584 = vmin.xlane.f32.xlu0 %v583
        %v585 = vpop.xlane.xlu0 %584
        %v586 = vmin.f32 %v390, %v391
        %587 = vmin.xlane.f32.xlu0 %v586
        %v588 = vpop.xlane.xlu0 %587
        %v589 = vmin.f32 %v392, %v393
        %590 = vmin.xlane.f32.xlu0 %v589
        %v591 = vpop.xlane.xlu0 %590
        %v592 = vmin.f32 %v394, %v395
        %593 = vmin.xlane.f32.xlu0 %v592
        %v594 = vpop.xlane.xlu0 %593
        %v595 = vmin.f32 %v396, %v397
        %596 = vmin.xlane.f32.xlu0 %v595
        %v597 = vpop.xlane.xlu0 %596
        %v598 = vmin.f32 %v398, %v399
        %599 = vmin.xlane.f32.xlu0 %v598
        %v600 = vpop.xlane.xlu0 %599
        %v601 = vmin.f32 %v400, %v401
        %602 = vmin.xlane.f32.xlu0 %v601
        %v603 = vpop.xlane.xlu0 %602
        %v604 = vmin.f32 %v402, %v403
        %605 = vmin.xlane.f32.xlu0 %v604
        %v606 = vpop.xlane.xlu0 %605
        %v607 = vmin.f32 %v404, %v405
        %608 = vmin.xlane.f32.xlu0 %v607
        %v609 = vpop.xlane.xlu0 %608
        %v610 = vmin.f32 %v406, %v407
        %611 = vmin.xlane.f32.xlu0 %v610
        %v612 = vpop.xlane.xlu0 %611
        %v613 = vmin.f32 %v408, %v409
        %614 = vmin.xlane.f32.xlu0 %v613
        %v615 = vpop.xlane.xlu0 %614
        %v616 = vmin.f32 %v410, %v411
        %617 = vmin.xlane.f32.xlu0 %v616
        %v618 = vpop.xlane.xlu0 %617
        %v619 = vmin.f32 %v412, %v413
        %620 = vmin.xlane.f32.xlu0 %v619
        %v621 = vpop.xlane.xlu0 %620
        %v622 = vmin.f32 %v414, %v415
        %623 = vmin.xlane.f32.xlu0 %v622
        %v624 = vpop.xlane.xlu0 %623
        %625 = vst.msk [vmem:[%s334] sm:$0xff] %vm496, %v579
        %626 = vst.msk [vmem:[%s334 + $0x8] sm:$0xff] %vm496, %v582
        %627 = vst.msk [vmem:[%s334 + $0x10] sm:$0xff] %vm496, %v585
        %628 = vst.msk [vmem:[%s334 + $0x18] sm:$0xff] %vm496, %v588
        %629 = vst.msk [vmem:[%s334 + $0x20] sm:$0xff] %vm496, %v591
        %630 = vst.msk [vmem:[%s334 + $0x28] sm:$0xff] %vm496, %v594
        %631 = vst.msk [vmem:[%s334 + $0x30] sm:$0xff] %vm496, %v597
        %632 = vst.msk [vmem:[%s334 + $0x38] sm:$0xff] %vm496, %v600
        %633 = vst.msk [vmem:[%s334 + $0x40] sm:$0xff] %vm496, %v603
        %634 = vst.msk [vmem:[%s334 + $0x48] sm:$0xff] %vm496, %v606
        %635 = vst.msk [vmem:[%s334 + $0x50] sm:$0xff] %vm496, %v609
        %636 = vst.msk [vmem:[%s334 + $0x58] sm:$0xff] %vm496, %v612
        %637 = vst.msk [vmem:[%s334 + $0x60] sm:$0xff] %vm496, %v615
        %638 = vst.msk [vmem:[%s334 + $0x68] sm:$0xff] %vm496, %v618
        %639 = vst.msk [vmem:[%s334 + $0x70] sm:$0xff] %vm496, %v621
        %640 = vst.msk [vmem:[%s334 + $0x78] sm:$0xff] %vm496, %v624
        %v641 = vmax.f32 %v384, %v385
        %642 = vmax.xlane.f32.xlu0 %v641
        %v643 = vpop.xlane.xlu0 %642
        %v644 = vmax.f32 %v386, %v387
        %645 = vmax.xlane.f32.xlu0 %v644
        %v646 = vpop.xlane.xlu0 %645
        %v647 = vmax.f32 %v388, %v389
        %648 = vmax.xlane.f32.xlu0 %v647
        %v649 = vpop.xlane.xlu0 %648
        %v650 = vmax.f32 %v390, %v391
        %651 = vmax.xlane.f32.xlu0 %v650
        %v652 = vpop.xlane.xlu0 %651
        %v653 = vmax.f32 %v392, %v393
        %654 = vmax.xlane.f32.xlu0 %v653
        %v655 = vpop.xlane.xlu0 %654
        %v656 = vmax.f32 %v394, %v395
        %657 = vmax.xlane.f32.xlu0 %v656
        %v658 = vpop.xlane.xlu0 %657
        %v659 = vmax.f32 %v396, %v397
        %660 = vmax.xlane.f32.xlu0 %v659
        %v661 = vpop.xlane.xlu0 %660
        %v662 = vmax.f32 %v398, %v399
        %663 = vmax.xlane.f32.xlu0 %v662
        %v664 = vpop.xlane.xlu0 %663
        %v665 = vmax.f32 %v400, %v401
        %666 = vmax.xlane.f32.xlu0 %v665
        %v667 = vpop.xlane.xlu0 %666
        %v668 = vmax.f32 %v402, %v403
        %669 = vmax.xlane.f32.xlu0 %v668
        %v670 = vpop.xlane.xlu0 %669
        %v671 = vmax.f32 %v404, %v405
        %672 = vmax.xlane.f32.xlu0 %v671
        %v673 = vpop.xlane.xlu0 %672
        %v674 = vmax.f32 %v406, %v407
        %675 = vmax.xlane.f32.xlu0 %v674
        %v676 = vpop.xlane.xlu0 %675
        %v677 = vmax.f32 %v408, %v409
        %678 = vmax.xlane.f32.xlu0 %v677
        %v679 = vpop.xlane.xlu0 %678
        %v680 = vmax.f32 %v410, %v411
        %681 = vmax.xlane.f32.xlu0 %v680
        %v682 = vpop.xlane.xlu0 %681
        %v683 = vmax.f32 %v412, %v413
        %684 = vmax.xlane.f32.xlu0 %v683
        %v685 = vpop.xlane.xlu0 %684
        %v686 = vmax.f32 %v414, %v415
        %687 = vmax.xlane.f32.xlu0 %v686
        %v688 = vpop.xlane.xlu0 %687
        %689 = vst.msk [vmem:[%s340] sm:$0xff] %vm496, %v643
        %690 = vst.msk [vmem:[%s340 + $0x8] sm:$0xff] %vm496, %v646
        %691 = vst.msk [vmem:[%s340 + $0x10] sm:$0xff] %vm496, %v649
        %692 = vst.msk [vmem:[%s340 + $0x18] sm:$0xff] %vm496, %v652
        %693 = vst.msk [vmem:[%s340 + $0x20] sm:$0xff] %vm496, %v655
        %694 = vst.msk [vmem:[%s340 + $0x28] sm:$0xff] %vm496, %v658
        %695 = vst.msk [vmem:[%s340 + $0x30] sm:$0xff] %vm496, %v661
        %696 = vst.msk [vmem:[%s340 + $0x38] sm:$0xff] %vm496, %v664
        %697 = vst.msk [vmem:[%s340 + $0x40] sm:$0xff] %vm496, %v667
        %698 = vst.msk [vmem:[%s340 + $0x48] sm:$0xff] %vm496, %v670
        %699 = vst.msk [vmem:[%s340 + $0x50] sm:$0xff] %vm496, %v673
        %700 = vst.msk [vmem:[%s340 + $0x58] sm:$0xff] %vm496, %v676
        %701 = vst.msk [vmem:[%s340 + $0x60] sm:$0xff] %vm496, %v679
        %702 = vst.msk [vmem:[%s340 + $0x68] sm:$0xff] %vm496, %v682
        %703 = vst.msk [vmem:[%s340 + $0x70] sm:$0xff] %vm496, %v685
        %704 = vst.msk [vmem:[%s340 + $0x78] sm:$0xff] %vm496, %v688
        %v705 = vmul.f32 %v384, %v384
        %v706 = vmul.f32 %v385, %v385
        %v707 = vmul.f32 %v386, %v386
        %v708 = vmul.f32 %v387, %v387
        %v709 = vmul.f32 %v388, %v388
        %v710 = vmul.f32 %v389, %v389
        %v711 = vmul.f32 %v390, %v390
        %v712 = vmul.f32 %v391, %v391
        %v713 = vmul.f32 %v392, %v392
        %v714 = vmul.f32 %v393, %v393
        %v715 = vmul.f32 %v394, %v394
        %v716 = vmul.f32 %v395, %v395
        %v717 = vmul.f32 %v396, %v396
        %v718 = vmul.f32 %v397, %v397
        %v719 = vmul.f32 %v398, %v398
        %v720 = vmul.f32 %v399, %v399
        %v721 = vmul.f32 %v400, %v400
        %v722 = vmul.f32 %v401, %v401
        %v723 = vmul.f32 %v402, %v402
        %v724 = vmul.f32 %v403, %v403
        %v725 = vmul.f32 %v404, %v404
        %v726 = vmul.f32 %v405, %v405
        %v727 = vmul.f32 %v406, %v406
        %v728 = vmul.f32 %v407, %v407
        %v729 = vmul.f32 %v408, %v408
        %v730 = vmul.f32 %v409, %v409
        %v731 = vmul.f32 %v410, %v410
        %v732 = vmul.f32 %v411, %v411
        %v733 = vmul.f32 %v412, %v412
        %v734 = vmul.f32 %v413, %v413
        %v735 = vmul.f32 %v414, %v414
        %v736 = vmul.f32 %v415, %v415
        %v737 = vadd.f32 %v705, %v706
        %738 = vadd.xlane.f32.xlu0 %v737
        %v739 = vpop.xlane.xlu0 %738
        %v740 = vadd.f32 %v707, %v708
        %741 = vadd.xlane.f32.xlu0 %v740
        %v742 = vpop.xlane.xlu0 %741
        %v743 = vadd.f32 %v709, %v710
        %744 = vadd.xlane.f32.xlu0 %v743
        %v745 = vpop.xlane.xlu0 %744
        %v746 = vadd.f32 %v711, %v712
        %747 = vadd.xlane.f32.xlu0 %v746
        %v748 = vpop.xlane.xlu0 %747
        %v749 = vadd.f32 %v713, %v714
        %750 = vadd.xlane.f32.xlu0 %v749
        %v751 = vpop.xlane.xlu0 %750
        %v752 = vadd.f32 %v715, %v716
        %753 = vadd.xlane.f32.xlu0 %v752
        %v754 = vpop.xlane.xlu0 %753
        %v755 = vadd.f32 %v717, %v718
        %756 = vadd.xlane.f32.xlu0 %v755
        %v757 = vpop.xlane.xlu0 %756
        %v758 = vadd.f32 %v719, %v720
        %759 = vadd.xlane.f32.xlu0 %v758
        %v760 = vpop.xlane.xlu0 %759
        %v761 = vadd.f32 %v721, %v722
        %762 = vadd.xlane.f32.xlu0 %v761
        %v763 = vpop.xlane.xlu0 %762
        %v764 = vadd.f32 %v723, %v724
        %765 = vadd.xlane.f32.xlu0 %v764
        %v766 = vpop.xlane.xlu0 %765
        %v767 = vadd.f32 %v725, %v726
        %768 = vadd.xlane.f32.xlu0 %v767
        %v769 = vpop.xlane.xlu0 %768
        %v770 = vadd.f32 %v727, %v728
        %771 = vadd.xlane.f32.xlu0 %v770
        %v772 = vpop.xlane.xlu0 %771
        %v773 = vadd.f32 %v729, %v730
        %774 = vadd.xlane.f32.xlu0 %v773
        %v775 = vpop.xlane.xlu0 %774
        %v776 = vadd.f32 %v731, %v732
        %777 = vadd.xlane.f32.xlu0 %v776
        %v778 = vpop.xlane.xlu0 %777
        %v779 = vadd.f32 %v733, %v734
        %780 = vadd.xlane.f32.xlu0 %v779
        %v781 = vpop.xlane.xlu0 %780
        %v782 = vadd.f32 %v735, %v736
        %783 = vadd.xlane.f32.xlu0 %v782
        %v784 = vpop.xlane.xlu0 %783
        %785 = vst.msk [vmem:[%s346] sm:$0xff] %vm496, %v739
        %786 = vst.msk [vmem:[%s346 + $0x8] sm:$0xff] %vm496, %v742
        %787 = vst.msk [vmem:[%s346 + $0x10] sm:$0xff] %vm496, %v745
        %788 = vst.msk [vmem:[%s346 + $0x18] sm:$0xff] %vm496, %v748
        %789 = vst.msk [vmem:[%s346 + $0x20] sm:$0xff] %vm496, %v751
        %790 = vst.msk [vmem:[%s346 + $0x28] sm:$0xff] %vm496, %v754
        %791 = vst.msk [vmem:[%s346 + $0x30] sm:$0xff] %vm496, %v757
        %792 = vst.msk [vmem:[%s346 + $0x38] sm:$0xff] %vm496, %v760
        %793 = vst.msk [vmem:[%s346 + $0x40] sm:$0xff] %vm496, %v763
        %794 = vst.msk [vmem:[%s346 + $0x48] sm:$0xff] %vm496, %v766
        %795 = vst.msk [vmem:[%s346 + $0x50] sm:$0xff] %vm496, %v769
        %796 = vst.msk [vmem:[%s346 + $0x58] sm:$0xff] %vm496, %v772
        %797 = vst.msk [vmem:[%s346 + $0x60] sm:$0xff] %vm496, %v775
        %798 = vst.msk [vmem:[%s346 + $0x68] sm:$0xff] %vm496, %v778
        %799 = vst.msk [vmem:[%s346 + $0x70] sm:$0xff] %vm496, %v781
        %800 = vst.msk [vmem:[%s346 + $0x78] sm:$0xff] %vm496, %v784
        %s801 = sand.u32 %s84, 1
        %s802 = sand.u32 %s84, 1
        %s803 = smul.addr %s802, 128
        %s804 = scalar_lea.vmem [#allocation6], %s803
        %s805 = sand.u32 %s110, 1
        %s806 = sand.u32 %s110, 1
        %s807 = smul.addr %s806, 128
        %s808 = scalar_lea.vmem [#allocation7], %s807
        %s809 = sand.u32 %s136, 1
        %s810 = sand.u32 %s136, 1
        %s811 = smul.addr %s810, 128
        %s812 = scalar_lea.vmem [#allocation8], %s811
        %s813 = sand.u32 %s162, 1
        %s814 = sand.u32 %s162, 1
        %s815 = smul.addr %s814, 128
        %s816 = scalar_lea.vmem [#allocation9], %s815
        %s817 = sand.u32 %s188, 1
        %s818 = sand.u32 %s188, 1
        %s819 = smul.addr %s818, 128
        %s820 = scalar_lea.vmem [#allocation10], %s819
        // Predicated region
        $region37: #{_cnencoder_forward.2} parent=27 // pred_check
          %p821 = pneg %p94
        $region38: #{_cnencoder_forward.2} parent=27 // pred_check_branch
          %823 = sbr.rel (%p821) target = $region40
        $region39: #{_cnencoder_forward.2} parent=27 // pred_region
          %s824 = smul.u32 16, %s24
          %s825 = ssub.s32 40, %s824
          %p826 = scmp.lt.s32.totalorder %s825, 16
          %s827 = scalar_select %p826, %s825, 16
          %s828 = smul.u32 128, %s827
          %p829 = scmp.ne.s32.totalorder 0, %s828
          %s830 = smul.addr %s824, 8
          %s831 = scalar_lea.vmem %s2, %s830
          // Predicated region
          $region41: #{_cnencoder_forward.2} parent=39 // pred_check
            %p832 = pneg %p829
          $region42: #{_cnencoder_forward.2} parent=39 // pred_check_branch
            %834 = sbr.rel (%p832) target = $region44
          $region43: #{_cnencoder_forward.2} parent=39 // pred_region
            // Predicated region
            $region45: #{_cnencoder_forward.2} parent=43 // pred_check
              _
            $region46: #{_cnencoder_forward.2} parent=43 // pred_check_branch
              %836 = sbr.rel (0) target = $region48
            $region47: #{_cnencoder_forward.2} parent=43 // pred_region
              // Predicated region
              $region67: #{_cnencoder_forward.2} parent=47 // pred_check
                _
              $region68: #{_cnencoder_forward.2} parent=47 // pred_check_branch
                %916 = sbr.rel (0) target = $region70
              $region69: #{_cnencoder_forward.2} parent=47 // pred_region
                %s917 = sshrl.u32 %s827, 4
                // While loop
                $region71: #{_cnencoder_forward.2} parent=69 // loop_pre_header
                  _
                $region72: #{_cnencoder_forward.2} parent=69 // loop_header
                  %s919 = sphi 0, %s921
                  %p920 = scmp.ge.s32.totalorder %s919, %s917
                  %s924 = sphi 0, %s961
                  %s925 = sphi %s804, %s964
                  %s926 = sphi %s831, %s965
                $region73: #{_cnencoder_forward.2} parent=69 // loop_header_branch
                  %923 = sbr.rel (%p920) target = $region77
                $region74: #{_cnencoder_forward.2} parent=69 // loop_body
                  %v927 = vld [vmem:[%s925] sm:$0xff]
                  %928 = vst [vmem:[%s926] sm:$0xff] %v927
                  %v929 = vld [vmem:[%s925 + $0x8] sm:$0xff]
                  %930 = vst [vmem:[%s926 + $0x8] sm:$0xff] %v929
                  %v931 = vld [vmem:[%s925 + $0x10] sm:$0xff]
                  %932 = vst [vmem:[%s926 + $0x10] sm:$0xff] %v931
                  %v933 = vld [vmem:[%s925 + $0x18] sm:$0xff]
                  %934 = vst [vmem:[%s926 + $0x18] sm:$0xff] %v933
                  %v935 = vld [vmem:[%s925 + $0x20] sm:$0xff]
                  %936 = vst [vmem:[%s926 + $0x20] sm:$0xff] %v935
                  %v937 = vld [vmem:[%s925 + $0x28] sm:$0xff]
                  %938 = vst [vmem:[%s926 + $0x28] sm:$0xff] %v937
                  %v939 = vld [vmem:[%s925 + $0x30] sm:$0xff]
                  %940 = vst [vmem:[%s926 + $0x30] sm:$0xff] %v939
                  %v941 = vld [vmem:[%s925 + $0x38] sm:$0xff]
                  %942 = vst [vmem:[%s926 + $0x38] sm:$0xff] %v941
                  %v943 = vld [vmem:[%s925 + $0x40] sm:$0xff]
                  %944 = vst [vmem:[%s926 + $0x40] sm:$0xff] %v943
                  %v945 = vld [vmem:[%s925 + $0x48] sm:$0xff]
                  %946 = vst [vmem:[%s926 + $0x48] sm:$0xff] %v945
                  %v947 = vld [vmem:[%s925 + $0x50] sm:$0xff]
                  %948 = vst [vmem:[%s926 + $0x50] sm:$0xff] %v947
                  %v949 = vld [vmem:[%s925 + $0x58] sm:$0xff]
                  %950 = vst [vmem:[%s926 + $0x58] sm:$0xff] %v949
                  %v951 = vld [vmem:[%s925 + $0x60] sm:$0xff]
                  %952 = vst [vmem:[%s926 + $0x60] sm:$0xff] %v951
                  %v953 = vld [vmem:[%s925 + $0x68] sm:$0xff]
                  %954 = vst [vmem:[%s926 + $0x68] sm:$0xff] %v953
                  %v955 = vld [vmem:[%s925 + $0x70] sm:$0xff]
                  %956 = vst [vmem:[%s926 + $0x70] sm:$0xff] %v955
                  %v957 = vld [vmem:[%s925 + $0x78] sm:$0xff]
                  %958 = vst [vmem:[%s926 + $0x78] sm:$0xff] %v957
                  %s959 = sadd.s32 1, %s924
                  %p960 = scmp.ge.s32.totalorder %s959, %s917
                  %s961 = scalar_select %p960, 0, %s959
                  %s962 = smul.u32 %s961, 128
                  %s963 = smul.u32 %s961, 128
                  %s964 = scalar_lea.vmem %s804, %s962 [#allocation6]
                  %s965 = scalar_lea.vmem %s831, %s963
                $region75: #{_cnencoder_forward.2} parent=69 // loop_footer
                  %s921 = sadd.s32 %s919, 1
                $region76: #{_cnencoder_forward.2} parent=69 // loop_footer_branch
                  %918 = sbr.rel target = $region72
                $region77: #{_cnencoder_forward.2} parent=69 // loop_exit
                  _
                %s966 = sshrl.u32 %s827, 4
                %s967 = sand.u32 %s827, 15
                %s968 = smul.u32 %s966, 16
                %s969 = smul.u32 8, %s968
                %s970 = scalar_lea.vmem %s804, %s969 [#allocation6]
                %s971 = smul.u32 8, %s968
                %s972 = scalar_lea.vmem %s831, %s971
                // While loop
                $region78: #{_cnencoder_forward.2} parent=69 // loop_pre_header
                  _
                $region79: #{_cnencoder_forward.2} parent=69 // loop_header
                  %s974 = sphi 0, %s976
                  %p975 = scmp.ge.s32.totalorder %s974, %s967
                  %s979 = sphi 0, %s986
                  %s980 = sphi %s970, %s989
                  %s981 = sphi %s972, %s990
                $region80: #{_cnencoder_forward.2} parent=69 // loop_header_branch
                  %978 = sbr.rel (%p975) target = $region84
                $region81: #{_cnencoder_forward.2} parent=69 // loop_body
                  %v982 = vld [vmem:[%s980] sm:$0xff]
                  %983 = vst [vmem:[%s981] sm:$0xff] %v982
                  %s984 = sadd.s32 1, %s979
                  %p985 = scmp.ge.s32.totalorder %s984, %s967
                  %s986 = scalar_select %p985, 0, %s984
                  %s987 = smul.u32 %s986, 8
                  %s988 = smul.u32 %s986, 8
                  %s989 = scalar_lea.vmem %s970, %s987 [#allocation6]
                  %s990 = scalar_lea.vmem %s972, %s988
                $region82: #{_cnencoder_forward.2} parent=69 // loop_footer
                  %s976 = sadd.s32 %s974, 1
                $region83: #{_cnencoder_forward.2} parent=69 // loop_footer_branch
                  %973 = sbr.rel target = $region79
                $region84: #{_cnencoder_forward.2} parent=69 // loop_exit
                  _
              $region70: #{_cnencoder_forward.2} parent=47 // pred_fallthru
                _
              // Predicated region
              $region85: #{_cnencoder_forward.2} parent=47 // pred_check
                _
              $region86: #{_cnencoder_forward.2} parent=47 // pred_check_branch
                %992 = sbr.rel target = $region88
              $region87: #{_cnencoder_forward.2} parent=47 // pred_region
                _
              $region88: #{_cnencoder_forward.2} parent=47 // pred_fallthru
                _
            $region48: #{_cnencoder_forward.2} parent=43 // pred_fallthru
              _
            // Predicated region
            $region49: #{_cnencoder_forward.2} parent=43 // pred_check
              _
            $region50: #{_cnencoder_forward.2} parent=43 // pred_check_branch
              %838 = sbr.rel target = $region52
            $region51: #{_cnencoder_forward.2} parent=43 // pred_region
              %s840 = ssub.s32 256, 1
              %s841 = sshrl.u32 %s827, 4
              // While loop
              $region53: #{_cnencoder_forward.2} parent=51 // loop_pre_header
                _
              $region54: #{_cnencoder_forward.2} parent=51 // loop_header
                %s843 = sphi 0, %s845
                %p844 = scmp.ge.s32.totalorder %s843, %s841
                %s848 = sphi 0, %s885
                %s849 = sphi %s804, %s888
                %s850 = sphi %s831, %s889
              $region55: #{_cnencoder_forward.2} parent=51 // loop_header_branch
                %847 = sbr.rel (%p844) target = $region59
              $region56: #{_cnencoder_forward.2} parent=51 // loop_body
                %v851 = vld [vmem:[%s849] sm:%s840]
                %852 = vst [vmem:[%s850] sm:%s840] %v851
                %v853 = vld [vmem:[%s849 + $0x8] sm:%s840]
                %854 = vst [vmem:[%s850 + $0x8] sm:%s840] %v853
                %v855 = vld [vmem:[%s849 + $0x10] sm:%s840]
                %856 = vst [vmem:[%s850 + $0x10] sm:%s840] %v855
                %v857 = vld [vmem:[%s849 + $0x18] sm:%s840]
                %858 = vst [vmem:[%s850 + $0x18] sm:%s840] %v857
                %v859 = vld [vmem:[%s849 + $0x20] sm:%s840]
                %860 = vst [vmem:[%s850 + $0x20] sm:%s840] %v859
                %v861 = vld [vmem:[%s849 + $0x28] sm:%s840]
                %862 = vst [vmem:[%s850 + $0x28] sm:%s840] %v861
                %v863 = vld [vmem:[%s849 + $0x30] sm:%s840]
                %864 = vst [vmem:[%s850 + $0x30] sm:%s840] %v863
                %v865 = vld [vmem:[%s849 + $0x38] sm:%s840]
                %866 = vst [vmem:[%s850 + $0x38] sm:%s840] %v865
                %v867 = vld [vmem:[%s849 + $0x40] sm:%s840]
                %868 = vst [vmem:[%s850 + $0x40] sm:%s840] %v867
                %v869 = vld [vmem:[%s849 + $0x48] sm:%s840]
                %870 = vst [vmem:[%s850 + $0x48] sm:%s840] %v869
                %v871 = vld [vmem:[%s849 + $0x50] sm:%s840]
                %872 = vst [vmem:[%s850 + $0x50] sm:%s840] %v871
                %v873 = vld [vmem:[%s849 + $0x58] sm:%s840]
                %874 = vst [vmem:[%s850 + $0x58] sm:%s840] %v873
                %v875 = vld [vmem:[%s849 + $0x60] sm:%s840]
                %876 = vst [vmem:[%s850 + $0x60] sm:%s840] %v875
                %v877 = vld [vmem:[%s849 + $0x68] sm:%s840]
                %878 = vst [vmem:[%s850 + $0x68] sm:%s840] %v877
                %v879 = vld [vmem:[%s849 + $0x70] sm:%s840]
                %880 = vst [vmem:[%s850 + $0x70] sm:%s840] %v879
                %v881 = vld [vmem:[%s849 + $0x78] sm:%s840]
                %882 = vst [vmem:[%s850 + $0x78] sm:%s840] %v881
                %s883 = sadd.s32 1, %s848
                %p884 = scmp.ge.s32.totalorder %s883, %s841
                %s885 = scalar_select %p884, 0, %s883
                %s886 = smul.u32 %s885, 128
                %s887 = smul.u32 %s885, 128
                %s888 = scalar_lea.vmem %s804, %s886 [#allocation6]
                %s889 = scalar_lea.vmem %s831, %s887
              $region57: #{_cnencoder_forward.2} parent=51 // loop_footer
                %s845 = sadd.s32 %s843, 1
              $region58: #{_cnencoder_forward.2} parent=51 // loop_footer_branch
                %842 = sbr.rel target = $region54
              $region59: #{_cnencoder_forward.2} parent=51 // loop_exit
                _
              %s890 = sshrl.u32 %s827, 4
              %s891 = sand.u32 %s827, 15
              %s892 = smul.u32 %s890, 16
              %s893 = smul.u32 8, %s892
              %s894 = scalar_lea.vmem %s804, %s893 [#allocation6]
              %s895 = smul.u32 8, %s892
              %s896 = scalar_lea.vmem %s831, %s895
              // While loop
              $region60: #{_cnencoder_forward.2} parent=51 // loop_pre_header
                _
              $region61: #{_cnencoder_forward.2} parent=51 // loop_header
                %s898 = sphi 0, %s900
                %p899 = scmp.ge.s32.totalorder %s898, %s891
                %s903 = sphi 0, %s910
                %s904 = sphi %s894, %s913
                %s905 = sphi %s896, %s914
              $region62: #{_cnencoder_forward.2} parent=51 // loop_header_branch
                %902 = sbr.rel (%p899) target = $region66
              $region63: #{_cnencoder_forward.2} parent=51 // loop_body
                %v906 = vld [vmem:[%s904] sm:%s840]
                %907 = vst [vmem:[%s905] sm:%s840] %v906
                %s908 = sadd.s32 1, %s903
                %p909 = scmp.ge.s32.totalorder %s908, %s891
                %s910 = scalar_select %p909, 0, %s908
                %s911 = smul.u32 %s910, 8
                %s912 = smul.u32 %s910, 8
                %s913 = scalar_lea.vmem %s894, %s911 [#allocation6]
                %s914 = scalar_lea.vmem %s896, %s912
              $region64: #{_cnencoder_forward.2} parent=51 // loop_footer
                %s900 = sadd.s32 %s898, 1
              $region65: #{_cnencoder_forward.2} parent=51 // loop_footer_branch
                %897 = sbr.rel target = $region61
              $region66: #{_cnencoder_forward.2} parent=51 // loop_exit
                _
            $region52: #{_cnencoder_forward.2} parent=43 // pred_fallthru
              _
          $region44: #{_cnencoder_forward.2} parent=39 // pred_fallthru
            _
          %993 = vnop
        $region40: #{_cnencoder_forward.2} parent=27 // pred_fallthru
          _
        // Predicated region
        $region89: #{_cnencoder_forward.2} parent=27 // pred_check
          %p994 = pneg %p120
        $region90: #{_cnencoder_forward.2} parent=27 // pred_check_branch
          %996 = sbr.rel (%p994) target = $region92
        $region91: #{_cnencoder_forward.2} parent=27 // pred_region
          %s997 = smul.u32 16, %s24
          %s998 = ssub.s32 40, %s997
          %p999 = scmp.lt.s32.totalorder %s998, 16
          %s1000 = scalar_select %p999, %s998, 16
          %s1001 = smul.u32 128, %s1000
          %p1002 = scmp.ne.s32.totalorder 0, %s1001
          %s1003 = smul.addr %s997, 8
          %s1004 = scalar_lea.vmem %s3, %s1003
          // Predicated region
          $region93: #{_cnencoder_forward.2} parent=91 // pred_check
            %p1005 = pneg %p1002
          $region94: #{_cnencoder_forward.2} parent=91 // pred_check_branch
            %1007 = sbr.rel (%p1005) target = $region96
          $region95: #{_cnencoder_forward.2} parent=91 // pred_region
            // Predicated region
            $region97: #{_cnencoder_forward.2} parent=95 // pred_check
              _
            $region98: #{_cnencoder_forward.2} parent=95 // pred_check_branch
              %1009 = sbr.rel (0) target = $region100
            $region99: #{_cnencoder_forward.2} parent=95 // pred_region
              // Predicated region
              $region119: #{_cnencoder_forward.2} parent=99 // pred_check
                _
              $region120: #{_cnencoder_forward.2} parent=99 // pred_check_branch
                %1089 = sbr.rel (0) target = $region122
              $region121: #{_cnencoder_forward.2} parent=99 // pred_region
                %s1090 = sshrl.u32 %s1000, 4
                // While loop
                $region123: #{_cnencoder_forward.2} parent=121 // loop_pre_header
                  _
                $region124: #{_cnencoder_forward.2} parent=121 // loop_header
                  %s1092 = sphi 0, %s1094
                  %p1093 = scmp.ge.s32.totalorder %s1092, %s1090
                  %s1097 = sphi 0, %s1134
                  %s1098 = sphi %s808, %s1137
                  %s1099 = sphi %s1004, %s1138
                $region125: #{_cnencoder_forward.2} parent=121 // loop_header_branch
                  %1096 = sbr.rel (%p1093) target = $region129
                $region126: #{_cnencoder_forward.2} parent=121 // loop_body
                  %v1100 = vld [vmem:[%s1098] sm:$0xff]
                  %1101 = vst [vmem:[%s1099] sm:$0xff] %v1100
                  %v1102 = vld [vmem:[%s1098 + $0x8] sm:$0xff]
                  %1103 = vst [vmem:[%s1099 + $0x8] sm:$0xff] %v1102
                  %v1104 = vld [vmem:[%s1098 + $0x10] sm:$0xff]
                  %1105 = vst [vmem:[%s1099 + $0x10] sm:$0xff] %v1104
                  %v1106 = vld [vmem:[%s1098 + $0x18] sm:$0xff]
                  %1107 = vst [vmem:[%s1099 + $0x18] sm:$0xff] %v1106
                  %v1108 = vld [vmem:[%s1098 + $0x20] sm:$0xff]
                  %1109 = vst [vmem:[%s1099 + $0x20] sm:$0xff] %v1108
                  %v1110 = vld [vmem:[%s1098 + $0x28] sm:$0xff]
                  %1111 = vst [vmem:[%s1099 + $0x28] sm:$0xff] %v1110
                  %v1112 = vld [vmem:[%s1098 + $0x30] sm:$0xff]
                  %1113 = vst [vmem:[%s1099 + $0x30] sm:$0xff] %v1112
                  %v1114 = vld [vmem:[%s1098 + $0x38] sm:$0xff]
                  %1115 = vst [vmem:[%s1099 + $0x38] sm:$0xff] %v1114
                  %v1116 = vld [vmem:[%s1098 + $0x40] sm:$0xff]
                  %1117 = vst [vmem:[%s1099 + $0x40] sm:$0xff] %v1116
                  %v1118 = vld [vmem:[%s1098 + $0x48] sm:$0xff]
                  %1119 = vst [vmem:[%s1099 + $0x48] sm:$0xff] %v1118
                  %v1120 = vld [vmem:[%s1098 + $0x50] sm:$0xff]
                  %1121 = vst [vmem:[%s1099 + $0x50] sm:$0xff] %v1120
                  %v1122 = vld [vmem:[%s1098 + $0x58] sm:$0xff]
                  %1123 = vst [vmem:[%s1099 + $0x58] sm:$0xff] %v1122
                  %v1124 = vld [vmem:[%s1098 + $0x60] sm:$0xff]
                  %1125 = vst [vmem:[%s1099 + $0x60] sm:$0xff] %v1124
                  %v1126 = vld [vmem:[%s1098 + $0x68] sm:$0xff]
                  %1127 = vst [vmem:[%s1099 + $0x68] sm:$0xff] %v1126
                  %v1128 = vld [vmem:[%s1098 + $0x70] sm:$0xff]
                  %1129 = vst [vmem:[%s1099 + $0x70] sm:$0xff] %v1128
                  %v1130 = vld [vmem:[%s1098 + $0x78] sm:$0xff]
                  %1131 = vst [vmem:[%s1099 + $0x78] sm:$0xff] %v1130
                  %s1132 = sadd.s32 1, %s1097
                  %p1133 = scmp.ge.s32.totalorder %s1132, %s1090
                  %s1134 = scalar_select %p1133, 0, %s1132
                  %s1135 = smul.u32 %s1134, 128
                  %s1136 = smul.u32 %s1134, 128
                  %s1137 = scalar_lea.vmem %s808, %s1135 [#allocation7]
                  %s1138 = scalar_lea.vmem %s1004, %s1136
                $region127: #{_cnencoder_forward.2} parent=121 // loop_footer
                  %s1094 = sadd.s32 %s1092, 1
                $region128: #{_cnencoder_forward.2} parent=121 // loop_footer_branch
                  %1091 = sbr.rel target = $region124
                $region129: #{_cnencoder_forward.2} parent=121 // loop_exit
                  _
                %s1139 = sshrl.u32 %s1000, 4
                %s1140 = sand.u32 %s1000, 15
                %s1141 = smul.u32 %s1139, 16
                %s1142 = smul.u32 8, %s1141
                %s1143 = scalar_lea.vmem %s808, %s1142 [#allocation7]
                %s1144 = smul.u32 8, %s1141
                %s1145 = scalar_lea.vmem %s1004, %s1144
                // While loop
                $region130: #{_cnencoder_forward.2} parent=121 // loop_pre_header
                  _
                $region131: #{_cnencoder_forward.2} parent=121 // loop_header
                  %s1147 = sphi 0, %s1149
                  %p1148 = scmp.ge.s32.totalorder %s1147, %s1140
                  %s1152 = sphi 0, %s1159
                  %s1153 = sphi %s1143, %s1162
                  %s1154 = sphi %s1145, %s1163
                $region132: #{_cnencoder_forward.2} parent=121 // loop_header_branch
                  %1151 = sbr.rel (%p1148) target = $region136
                $region133: #{_cnencoder_forward.2} parent=121 // loop_body
                  %v1155 = vld [vmem:[%s1153] sm:$0xff]
                  %1156 = vst [vmem:[%s1154] sm:$0xff] %v1155
                  %s1157 = sadd.s32 1, %s1152
                  %p1158 = scmp.ge.s32.totalorder %s1157, %s1140
                  %s1159 = scalar_select %p1158, 0, %s1157
                  %s1160 = smul.u32 %s1159, 8
                  %s1161 = smul.u32 %s1159, 8
                  %s1162 = scalar_lea.vmem %s1143, %s1160 [#allocation7]
                  %s1163 = scalar_lea.vmem %s1145, %s1161
                $region134: #{_cnencoder_forward.2} parent=121 // loop_footer
                  %s1149 = sadd.s32 %s1147, 1
                $region135: #{_cnencoder_forward.2} parent=121 // loop_footer_branch
                  %1146 = sbr.rel target = $region131
                $region136: #{_cnencoder_forward.2} parent=121 // loop_exit
                  _
              $region122: #{_cnencoder_forward.2} parent=99 // pred_fallthru
                _
              // Predicated region
              $region137: #{_cnencoder_forward.2} parent=99 // pred_check
                _
              $region138: #{_cnencoder_forward.2} parent=99 // pred_check_branch
                %1165 = sbr.rel target = $region140
              $region139: #{_cnencoder_forward.2} parent=99 // pred_region
                _
              $region140: #{_cnencoder_forward.2} parent=99 // pred_fallthru
                _
            $region100: #{_cnencoder_forward.2} parent=95 // pred_fallthru
              _
            // Predicated region
            $region101: #{_cnencoder_forward.2} parent=95 // pred_check
              _
            $region102: #{_cnencoder_forward.2} parent=95 // pred_check_branch
              %1011 = sbr.rel target = $region104
            $region103: #{_cnencoder_forward.2} parent=95 // pred_region
              %s1013 = ssub.s32 256, 1
              %s1014 = sshrl.u32 %s1000, 4
              // While loop
              $region105: #{_cnencoder_forward.2} parent=103 // loop_pre_header
                _
              $region106: #{_cnencoder_forward.2} parent=103 // loop_header
                %s1016 = sphi 0, %s1018
                %p1017 = scmp.ge.s32.totalorder %s1016, %s1014
                %s1021 = sphi 0, %s1058
                %s1022 = sphi %s808, %s1061
                %s1023 = sphi %s1004, %s1062
              $region107: #{_cnencoder_forward.2} parent=103 // loop_header_branch
                %1020 = sbr.rel (%p1017) target = $region111
              $region108: #{_cnencoder_forward.2} parent=103 // loop_body
                %v1024 = vld [vmem:[%s1022] sm:%s1013]
                %1025 = vst [vmem:[%s1023] sm:%s1013] %v1024
                %v1026 = vld [vmem:[%s1022 + $0x8] sm:%s1013]
                %1027 = vst [vmem:[%s1023 + $0x8] sm:%s1013] %v1026
                %v1028 = vld [vmem:[%s1022 + $0x10] sm:%s1013]
                %1029 = vst [vmem:[%s1023 + $0x10] sm:%s1013] %v1028
                %v1030 = vld [vmem:[%s1022 + $0x18] sm:%s1013]
                %1031 = vst [vmem:[%s1023 + $0x18] sm:%s1013] %v1030
                %v1032 = vld [vmem:[%s1022 + $0x20] sm:%s1013]
                %1033 = vst [vmem:[%s1023 + $0x20] sm:%s1013] %v1032
                %v1034 = vld [vmem:[%s1022 + $0x28] sm:%s1013]
                %1035 = vst [vmem:[%s1023 + $0x28] sm:%s1013] %v1034
                %v1036 = vld [vmem:[%s1022 + $0x30] sm:%s1013]
                %1037 = vst [vmem:[%s1023 + $0x30] sm:%s1013] %v1036
                %v1038 = vld [vmem:[%s1022 + $0x38] sm:%s1013]
                %1039 = vst [vmem:[%s1023 + $0x38] sm:%s1013] %v1038
                %v1040 = vld [vmem:[%s1022 + $0x40] sm:%s1013]
                %1041 = vst [vmem:[%s1023 + $0x40] sm:%s1013] %v1040
                %v1042 = vld [vmem:[%s1022 + $0x48] sm:%s1013]
                %1043 = vst [vmem:[%s1023 + $0x48] sm:%s1013] %v1042
                %v1044 = vld [vmem:[%s1022 + $0x50] sm:%s1013]
                %1045 = vst [vmem:[%s1023 + $0x50] sm:%s1013] %v1044
                %v1046 = vld [vmem:[%s1022 + $0x58] sm:%s1013]
                %1047 = vst [vmem:[%s1023 + $0x58] sm:%s1013] %v1046
                %v1048 = vld [vmem:[%s1022 + $0x60] sm:%s1013]
                %1049 = vst [vmem:[%s1023 + $0x60] sm:%s1013] %v1048
                %v1050 = vld [vmem:[%s1022 + $0x68] sm:%s1013]
                %1051 = vst [vmem:[%s1023 + $0x68] sm:%s1013] %v1050
                %v1052 = vld [vmem:[%s1022 + $0x70] sm:%s1013]
                %1053 = vst [vmem:[%s1023 + $0x70] sm:%s1013] %v1052
                %v1054 = vld [vmem:[%s1022 + $0x78] sm:%s1013]
                %1055 = vst [vmem:[%s1023 + $0x78] sm:%s1013] %v1054
                %s1056 = sadd.s32 1, %s1021
                %p1057 = scmp.ge.s32.totalorder %s1056, %s1014
                %s1058 = scalar_select %p1057, 0, %s1056
                %s1059 = smul.u32 %s1058, 128
                %s1060 = smul.u32 %s1058, 128
                %s1061 = scalar_lea.vmem %s808, %s1059 [#allocation7]
                %s1062 = scalar_lea.vmem %s1004, %s1060
              $region109: #{_cnencoder_forward.2} parent=103 // loop_footer
                %s1018 = sadd.s32 %s1016, 1
              $region110: #{_cnencoder_forward.2} parent=103 // loop_footer_branch
                %1015 = sbr.rel target = $region106
              $region111: #{_cnencoder_forward.2} parent=103 // loop_exit
                _
              %s1063 = sshrl.u32 %s1000, 4
              %s1064 = sand.u32 %s1000, 15
              %s1065 = smul.u32 %s1063, 16
              %s1066 = smul.u32 8, %s1065
              %s1067 = scalar_lea.vmem %s808, %s1066 [#allocation7]
              %s1068 = smul.u32 8, %s1065
              %s1069 = scalar_lea.vmem %s1004, %s1068
              // While loop
              $region112: #{_cnencoder_forward.2} parent=103 // loop_pre_header
                _
              $region113: #{_cnencoder_forward.2} parent=103 // loop_header
                %s1071 = sphi 0, %s1073
                %p1072 = scmp.ge.s32.totalorder %s1071, %s1064
                %s1076 = sphi 0, %s1083
                %s1077 = sphi %s1067, %s1086
                %s1078 = sphi %s1069, %s1087
              $region114: #{_cnencoder_forward.2} parent=103 // loop_header_branch
                %1075 = sbr.rel (%p1072) target = $region118
              $region115: #{_cnencoder_forward.2} parent=103 // loop_body
                %v1079 = vld [vmem:[%s1077] sm:%s1013]
                %1080 = vst [vmem:[%s1078] sm:%s1013] %v1079
                %s1081 = sadd.s32 1, %s1076
                %p1082 = scmp.ge.s32.totalorder %s1081, %s1064
                %s1083 = scalar_select %p1082, 0, %s1081
                %s1084 = smul.u32 %s1083, 8
                %s1085 = smul.u32 %s1083, 8
                %s1086 = scalar_lea.vmem %s1067, %s1084 [#allocation7]
                %s1087 = scalar_lea.vmem %s1069, %s1085
              $region116: #{_cnencoder_forward.2} parent=103 // loop_footer
                %s1073 = sadd.s32 %s1071, 1
              $region117: #{_cnencoder_forward.2} parent=103 // loop_footer_branch
                %1070 = sbr.rel target = $region113
              $region118: #{_cnencoder_forward.2} parent=103 // loop_exit
                _
            $region104: #{_cnencoder_forward.2} parent=95 // pred_fallthru
              _
          $region96: #{_cnencoder_forward.2} parent=91 // pred_fallthru
            _
          %1166 = vnop
        $region92: #{_cnencoder_forward.2} parent=27 // pred_fallthru
          _
        // Predicated region
        $region141: #{_cnencoder_forward.2} parent=27 // pred_check
          %p1167 = pneg %p146
        $region142: #{_cnencoder_forward.2} parent=27 // pred_check_branch
          %1169 = sbr.rel (%p1167) target = $region144
        $region143: #{_cnencoder_forward.2} parent=27 // pred_region
          %s1170 = smul.u32 16, %s24
          %s1171 = ssub.s32 40, %s1170
          %p1172 = scmp.lt.s32.totalorder %s1171, 16
          %s1173 = scalar_select %p1172, %s1171, 16
          %s1174 = smul.u32 128, %s1173
          %p1175 = scmp.ne.s32.totalorder 0, %s1174
          %s1176 = smul.addr %s1170, 8
          %s1177 = scalar_lea.vmem %s4, %s1176
          // Predicated region
          $region145: #{_cnencoder_forward.2} parent=143 // pred_check
            %p1178 = pneg %p1175
          $region146: #{_cnencoder_forward.2} parent=143 // pred_check_branch
            %1180 = sbr.rel (%p1178) target = $region148
          $region147: #{_cnencoder_forward.2} parent=143 // pred_region
            // Predicated region
            $region149: #{_cnencoder_forward.2} parent=147 // pred_check
              _
            $region150: #{_cnencoder_forward.2} parent=147 // pred_check_branch
              %1182 = sbr.rel (0) target = $region152
            $region151: #{_cnencoder_forward.2} parent=147 // pred_region
              // Predicated region
              $region171: #{_cnencoder_forward.2} parent=151 // pred_check
                _
              $region172: #{_cnencoder_forward.2} parent=151 // pred_check_branch
                %1262 = sbr.rel (0) target = $region174
              $region173: #{_cnencoder_forward.2} parent=151 // pred_region
                %s1263 = sshrl.u32 %s1173, 4
                // While loop
                $region175: #{_cnencoder_forward.2} parent=173 // loop_pre_header
                  _
                $region176: #{_cnencoder_forward.2} parent=173 // loop_header
                  %s1265 = sphi 0, %s1267
                  %p1266 = scmp.ge.s32.totalorder %s1265, %s1263
                  %s1270 = sphi 0, %s1307
                  %s1271 = sphi %s812, %s1310
                  %s1272 = sphi %s1177, %s1311
                $region177: #{_cnencoder_forward.2} parent=173 // loop_header_branch
                  %1269 = sbr.rel (%p1266) target = $region181
                $region178: #{_cnencoder_forward.2} parent=173 // loop_body
                  %v1273 = vld [vmem:[%s1271] sm:$0xff]
                  %1274 = vst [vmem:[%s1272] sm:$0xff] %v1273
                  %v1275 = vld [vmem:[%s1271 + $0x8] sm:$0xff]
                  %1276 = vst [vmem:[%s1272 + $0x8] sm:$0xff] %v1275
                  %v1277 = vld [vmem:[%s1271 + $0x10] sm:$0xff]
                  %1278 = vst [vmem:[%s1272 + $0x10] sm:$0xff] %v1277
                  %v1279 = vld [vmem:[%s1271 + $0x18] sm:$0xff]
                  %1280 = vst [vmem:[%s1272 + $0x18] sm:$0xff] %v1279
                  %v1281 = vld [vmem:[%s1271 + $0x20] sm:$0xff]
                  %1282 = vst [vmem:[%s1272 + $0x20] sm:$0xff] %v1281
                  %v1283 = vld [vmem:[%s1271 + $0x28] sm:$0xff]
                  %1284 = vst [vmem:[%s1272 + $0x28] sm:$0xff] %v1283
                  %v1285 = vld [vmem:[%s1271 + $0x30] sm:$0xff]
                  %1286 = vst [vmem:[%s1272 + $0x30] sm:$0xff] %v1285
                  %v1287 = vld [vmem:[%s1271 + $0x38] sm:$0xff]
                  %1288 = vst [vmem:[%s1272 + $0x38] sm:$0xff] %v1287
                  %v1289 = vld [vmem:[%s1271 + $0x40] sm:$0xff]
                  %1290 = vst [vmem:[%s1272 + $0x40] sm:$0xff] %v1289
                  %v1291 = vld [vmem:[%s1271 + $0x48] sm:$0xff]
                  %1292 = vst [vmem:[%s1272 + $0x48] sm:$0xff] %v1291
                  %v1293 = vld [vmem:[%s1271 + $0x50] sm:$0xff]
                  %1294 = vst [vmem:[%s1272 + $0x50] sm:$0xff] %v1293
                  %v1295 = vld [vmem:[%s1271 + $0x58] sm:$0xff]
                  %1296 = vst [vmem:[%s1272 + $0x58] sm:$0xff] %v1295
                  %v1297 = vld [vmem:[%s1271 + $0x60] sm:$0xff]
                  %1298 = vst [vmem:[%s1272 + $0x60] sm:$0xff] %v1297
                  %v1299 = vld [vmem:[%s1271 + $0x68] sm:$0xff]
                  %1300 = vst [vmem:[%s1272 + $0x68] sm:$0xff] %v1299
                  %v1301 = vld [vmem:[%s1271 + $0x70] sm:$0xff]
                  %1302 = vst [vmem:[%s1272 + $0x70] sm:$0xff] %v1301
                  %v1303 = vld [vmem:[%s1271 + $0x78] sm:$0xff]
                  %1304 = vst [vmem:[%s1272 + $0x78] sm:$0xff] %v1303
                  %s1305 = sadd.s32 1, %s1270
                  %p1306 = scmp.ge.s32.totalorder %s1305, %s1263
                  %s1307 = scalar_select %p1306, 0, %s1305
                  %s1308 = smul.u32 %s1307, 128
                  %s1309 = smul.u32 %s1307, 128
                  %s1310 = scalar_lea.vmem %s812, %s1308 [#allocation8]
                  %s1311 = scalar_lea.vmem %s1177, %s1309
                $region179: #{_cnencoder_forward.2} parent=173 // loop_footer
                  %s1267 = sadd.s32 %s1265, 1
                $region180: #{_cnencoder_forward.2} parent=173 // loop_footer_branch
                  %1264 = sbr.rel target = $region176
                $region181: #{_cnencoder_forward.2} parent=173 // loop_exit
                  _
                %s1312 = sshrl.u32 %s1173, 4
                %s1313 = sand.u32 %s1173, 15
                %s1314 = smul.u32 %s1312, 16
                %s1315 = smul.u32 8, %s1314
                %s1316 = scalar_lea.vmem %s812, %s1315 [#allocation8]
                %s1317 = smul.u32 8, %s1314
                %s1318 = scalar_lea.vmem %s1177, %s1317
                // While loop
                $region182: #{_cnencoder_forward.2} parent=173 // loop_pre_header
                  _
                $region183: #{_cnencoder_forward.2} parent=173 // loop_header
                  %s1320 = sphi 0, %s1322
                  %p1321 = scmp.ge.s32.totalorder %s1320, %s1313
                  %s1325 = sphi 0, %s1332
                  %s1326 = sphi %s1316, %s1335
                  %s1327 = sphi %s1318, %s1336
                $region184: #{_cnencoder_forward.2} parent=173 // loop_header_branch
                  %1324 = sbr.rel (%p1321) target = $region188
                $region185: #{_cnencoder_forward.2} parent=173 // loop_body
                  %v1328 = vld [vmem:[%s1326] sm:$0xff]
                  %1329 = vst [vmem:[%s1327] sm:$0xff] %v1328
                  %s1330 = sadd.s32 1, %s1325
                  %p1331 = scmp.ge.s32.totalorder %s1330, %s1313
                  %s1332 = scalar_select %p1331, 0, %s1330
                  %s1333 = smul.u32 %s1332, 8
                  %s1334 = smul.u32 %s1332, 8
                  %s1335 = scalar_lea.vmem %s1316, %s1333 [#allocation8]
                  %s1336 = scalar_lea.vmem %s1318, %s1334
                $region186: #{_cnencoder_forward.2} parent=173 // loop_footer
                  %s1322 = sadd.s32 %s1320, 1
                $region187: #{_cnencoder_forward.2} parent=173 // loop_footer_branch
                  %1319 = sbr.rel target = $region183
                $region188: #{_cnencoder_forward.2} parent=173 // loop_exit
                  _
              $region174: #{_cnencoder_forward.2} parent=151 // pred_fallthru
                _
              // Predicated region
              $region189: #{_cnencoder_forward.2} parent=151 // pred_check
                _
              $region190: #{_cnencoder_forward.2} parent=151 // pred_check_branch
                %1338 = sbr.rel target = $region192
              $region191: #{_cnencoder_forward.2} parent=151 // pred_region
                _
              $region192: #{_cnencoder_forward.2} parent=151 // pred_fallthru
                _
            $region152: #{_cnencoder_forward.2} parent=147 // pred_fallthru
              _
            // Predicated region
            $region153: #{_cnencoder_forward.2} parent=147 // pred_check
              _
            $region154: #{_cnencoder_forward.2} parent=147 // pred_check_branch
              %1184 = sbr.rel target = $region156
            $region155: #{_cnencoder_forward.2} parent=147 // pred_region
              %s1186 = ssub.s32 256, 1
              %s1187 = sshrl.u32 %s1173, 4
              // While loop
              $region157: #{_cnencoder_forward.2} parent=155 // loop_pre_header
                _
              $region158: #{_cnencoder_forward.2} parent=155 // loop_header
                %s1189 = sphi 0, %s1191
                %p1190 = scmp.ge.s32.totalorder %s1189, %s1187
                %s1194 = sphi 0, %s1231
                %s1195 = sphi %s812, %s1234
                %s1196 = sphi %s1177, %s1235
              $region159: #{_cnencoder_forward.2} parent=155 // loop_header_branch
                %1193 = sbr.rel (%p1190) target = $region163
              $region160: #{_cnencoder_forward.2} parent=155 // loop_body
                %v1197 = vld [vmem:[%s1195] sm:%s1186]
                %1198 = vst [vmem:[%s1196] sm:%s1186] %v1197
                %v1199 = vld [vmem:[%s1195 + $0x8] sm:%s1186]
                %1200 = vst [vmem:[%s1196 + $0x8] sm:%s1186] %v1199
                %v1201 = vld [vmem:[%s1195 + $0x10] sm:%s1186]
                %1202 = vst [vmem:[%s1196 + $0x10] sm:%s1186] %v1201
                %v1203 = vld [vmem:[%s1195 + $0x18] sm:%s1186]
                %1204 = vst [vmem:[%s1196 + $0x18] sm:%s1186] %v1203
                %v1205 = vld [vmem:[%s1195 + $0x20] sm:%s1186]
                %1206 = vst [vmem:[%s1196 + $0x20] sm:%s1186] %v1205
                %v1207 = vld [vmem:[%s1195 + $0x28] sm:%s1186]
                %1208 = vst [vmem:[%s1196 + $0x28] sm:%s1186] %v1207
                %v1209 = vld [vmem:[%s1195 + $0x30] sm:%s1186]
                %1210 = vst [vmem:[%s1196 + $0x30] sm:%s1186] %v1209
                %v1211 = vld [vmem:[%s1195 + $0x38] sm:%s1186]
                %1212 = vst [vmem:[%s1196 + $0x38] sm:%s1186] %v1211
                %v1213 = vld [vmem:[%s1195 + $0x40] sm:%s1186]
                %1214 = vst [vmem:[%s1196 + $0x40] sm:%s1186] %v1213
                %v1215 = vld [vmem:[%s1195 + $0x48] sm:%s1186]
                %1216 = vst [vmem:[%s1196 + $0x48] sm:%s1186] %v1215
                %v1217 = vld [vmem:[%s1195 + $0x50] sm:%s1186]
                %1218 = vst [vmem:[%s1196 + $0x50] sm:%s1186] %v1217
                %v1219 = vld [vmem:[%s1195 + $0x58] sm:%s1186]
                %1220 = vst [vmem:[%s1196 + $0x58] sm:%s1186] %v1219
                %v1221 = vld [vmem:[%s1195 + $0x60] sm:%s1186]
                %1222 = vst [vmem:[%s1196 + $0x60] sm:%s1186] %v1221
                %v1223 = vld [vmem:[%s1195 + $0x68] sm:%s1186]
                %1224 = vst [vmem:[%s1196 + $0x68] sm:%s1186] %v1223
                %v1225 = vld [vmem:[%s1195 + $0x70] sm:%s1186]
                %1226 = vst [vmem:[%s1196 + $0x70] sm:%s1186] %v1225
                %v1227 = vld [vmem:[%s1195 + $0x78] sm:%s1186]
                %1228 = vst [vmem:[%s1196 + $0x78] sm:%s1186] %v1227
                %s1229 = sadd.s32 1, %s1194
                %p1230 = scmp.ge.s32.totalorder %s1229, %s1187
                %s1231 = scalar_select %p1230, 0, %s1229
                %s1232 = smul.u32 %s1231, 128
                %s1233 = smul.u32 %s1231, 128
                %s1234 = scalar_lea.vmem %s812, %s1232 [#allocation8]
                %s1235 = scalar_lea.vmem %s1177, %s1233
              $region161: #{_cnencoder_forward.2} parent=155 // loop_footer
                %s1191 = sadd.s32 %s1189, 1
              $region162: #{_cnencoder_forward.2} parent=155 // loop_footer_branch
                %1188 = sbr.rel target = $region158
              $region163: #{_cnencoder_forward.2} parent=155 // loop_exit
                _
              %s1236 = sshrl.u32 %s1173, 4
              %s1237 = sand.u32 %s1173, 15
              %s1238 = smul.u32 %s1236, 16
              %s1239 = smul.u32 8, %s1238
              %s1240 = scalar_lea.vmem %s812, %s1239 [#allocation8]
              %s1241 = smul.u32 8, %s1238
              %s1242 = scalar_lea.vmem %s1177, %s1241
              // While loop
              $region164: #{_cnencoder_forward.2} parent=155 // loop_pre_header
                _
              $region165: #{_cnencoder_forward.2} parent=155 // loop_header
                %s1244 = sphi 0, %s1246
                %p1245 = scmp.ge.s32.totalorder %s1244, %s1237
                %s1249 = sphi 0, %s1256
                %s1250 = sphi %s1240, %s1259
                %s1251 = sphi %s1242, %s1260
              $region166: #{_cnencoder_forward.2} parent=155 // loop_header_branch
                %1248 = sbr.rel (%p1245) target = $region170
              $region167: #{_cnencoder_forward.2} parent=155 // loop_body
                %v1252 = vld [vmem:[%s1250] sm:%s1186]
                %1253 = vst [vmem:[%s1251] sm:%s1186] %v1252
                %s1254 = sadd.s32 1, %s1249
                %p1255 = scmp.ge.s32.totalorder %s1254, %s1237
                %s1256 = scalar_select %p1255, 0, %s1254
                %s1257 = smul.u32 %s1256, 8
                %s1258 = smul.u32 %s1256, 8
                %s1259 = scalar_lea.vmem %s1240, %s1257 [#allocation8]
                %s1260 = scalar_lea.vmem %s1242, %s1258
              $region168: #{_cnencoder_forward.2} parent=155 // loop_footer
                %s1246 = sadd.s32 %s1244, 1
              $region169: #{_cnencoder_forward.2} parent=155 // loop_footer_branch
                %1243 = sbr.rel target = $region165
              $region170: #{_cnencoder_forward.2} parent=155 // loop_exit
                _
            $region156: #{_cnencoder_forward.2} parent=147 // pred_fallthru
              _
          $region148: #{_cnencoder_forward.2} parent=143 // pred_fallthru
            _
          %1339 = vnop
        $region144: #{_cnencoder_forward.2} parent=27 // pred_fallthru
          _
        // Predicated region
        $region193: #{_cnencoder_forward.2} parent=27 // pred_check
          %p1340 = pneg %p172
        $region194: #{_cnencoder_forward.2} parent=27 // pred_check_branch
          %1342 = sbr.rel (%p1340) target = $region196
        $region195: #{_cnencoder_forward.2} parent=27 // pred_region
          %s1343 = smul.u32 16, %s24
          %s1344 = ssub.s32 40, %s1343
          %p1345 = scmp.lt.s32.totalorder %s1344, 16
          %s1346 = scalar_select %p1345, %s1344, 16
          %s1347 = smul.u32 128, %s1346
          %p1348 = scmp.ne.s32.totalorder 0, %s1347
          %s1349 = smul.addr %s1343, 8
          %s1350 = scalar_lea.vmem %s5, %s1349
          // Predicated region
          $region197: #{_cnencoder_forward.2} parent=195 // pred_check
            %p1351 = pneg %p1348
          $region198: #{_cnencoder_forward.2} parent=195 // pred_check_branch
            %1353 = sbr.rel (%p1351) target = $region200
          $region199: #{_cnencoder_forward.2} parent=195 // pred_region
            // Predicated region
            $region201: #{_cnencoder_forward.2} parent=199 // pred_check
              _
            $region202: #{_cnencoder_forward.2} parent=199 // pred_check_branch
              %1355 = sbr.rel (0) target = $region204
            $region203: #{_cnencoder_forward.2} parent=199 // pred_region
              // Predicated region
              $region223: #{_cnencoder_forward.2} parent=203 // pred_check
                _
              $region224: #{_cnencoder_forward.2} parent=203 // pred_check_branch
                %1435 = sbr.rel (0) target = $region226
              $region225: #{_cnencoder_forward.2} parent=203 // pred_region
                %s1436 = sshrl.u32 %s1346, 4
                // While loop
                $region227: #{_cnencoder_forward.2} parent=225 // loop_pre_header
                  _
                $region228: #{_cnencoder_forward.2} parent=225 // loop_header
                  %s1438 = sphi 0, %s1440
                  %p1439 = scmp.ge.s32.totalorder %s1438, %s1436
                  %s1443 = sphi 0, %s1480
                  %s1444 = sphi %s816, %s1483
                  %s1445 = sphi %s1350, %s1484
                $region229: #{_cnencoder_forward.2} parent=225 // loop_header_branch
                  %1442 = sbr.rel (%p1439) target = $region233
                $region230: #{_cnencoder_forward.2} parent=225 // loop_body
                  %v1446 = vld [vmem:[%s1444] sm:$0xff]
                  %1447 = vst [vmem:[%s1445] sm:$0xff] %v1446
                  %v1448 = vld [vmem:[%s1444 + $0x8] sm:$0xff]
                  %1449 = vst [vmem:[%s1445 + $0x8] sm:$0xff] %v1448
                  %v1450 = vld [vmem:[%s1444 + $0x10] sm:$0xff]
                  %1451 = vst [vmem:[%s1445 + $0x10] sm:$0xff] %v1450
                  %v1452 = vld [vmem:[%s1444 + $0x18] sm:$0xff]
                  %1453 = vst [vmem:[%s1445 + $0x18] sm:$0xff] %v1452
                  %v1454 = vld [vmem:[%s1444 + $0x20] sm:$0xff]
                  %1455 = vst [vmem:[%s1445 + $0x20] sm:$0xff] %v1454
                  %v1456 = vld [vmem:[%s1444 + $0x28] sm:$0xff]
                  %1457 = vst [vmem:[%s1445 + $0x28] sm:$0xff] %v1456
                  %v1458 = vld [vmem:[%s1444 + $0x30] sm:$0xff]
                  %1459 = vst [vmem:[%s1445 + $0x30] sm:$0xff] %v1458
                  %v1460 = vld [vmem:[%s1444 + $0x38] sm:$0xff]
                  %1461 = vst [vmem:[%s1445 + $0x38] sm:$0xff] %v1460
                  %v1462 = vld [vmem:[%s1444 + $0x40] sm:$0xff]
                  %1463 = vst [vmem:[%s1445 + $0x40] sm:$0xff] %v1462
                  %v1464 = vld [vmem:[%s1444 + $0x48] sm:$0xff]
                  %1465 = vst [vmem:[%s1445 + $0x48] sm:$0xff] %v1464
                  %v1466 = vld [vmem:[%s1444 + $0x50] sm:$0xff]
                  %1467 = vst [vmem:[%s1445 + $0x50] sm:$0xff] %v1466
                  %v1468 = vld [vmem:[%s1444 + $0x58] sm:$0xff]
                  %1469 = vst [vmem:[%s1445 + $0x58] sm:$0xff] %v1468
                  %v1470 = vld [vmem:[%s1444 + $0x60] sm:$0xff]
                  %1471 = vst [vmem:[%s1445 + $0x60] sm:$0xff] %v1470
                  %v1472 = vld [vmem:[%s1444 + $0x68] sm:$0xff]
                  %1473 = vst [vmem:[%s1445 + $0x68] sm:$0xff] %v1472
                  %v1474 = vld [vmem:[%s1444 + $0x70] sm:$0xff]
                  %1475 = vst [vmem:[%s1445 + $0x70] sm:$0xff] %v1474
                  %v1476 = vld [vmem:[%s1444 + $0x78] sm:$0xff]
                  %1477 = vst [vmem:[%s1445 + $0x78] sm:$0xff] %v1476
                  %s1478 = sadd.s32 1, %s1443
                  %p1479 = scmp.ge.s32.totalorder %s1478, %s1436
                  %s1480 = scalar_select %p1479, 0, %s1478
                  %s1481 = smul.u32 %s1480, 128
                  %s1482 = smul.u32 %s1480, 128
                  %s1483 = scalar_lea.vmem %s816, %s1481 [#allocation9]
                  %s1484 = scalar_lea.vmem %s1350, %s1482
                $region231: #{_cnencoder_forward.2} parent=225 // loop_footer
                  %s1440 = sadd.s32 %s1438, 1
                $region232: #{_cnencoder_forward.2} parent=225 // loop_footer_branch
                  %1437 = sbr.rel target = $region228
                $region233: #{_cnencoder_forward.2} parent=225 // loop_exit
                  _
                %s1485 = sshrl.u32 %s1346, 4
                %s1486 = sand.u32 %s1346, 15
                %s1487 = smul.u32 %s1485, 16
                %s1488 = smul.u32 8, %s1487
                %s1489 = scalar_lea.vmem %s816, %s1488 [#allocation9]
                %s1490 = smul.u32 8, %s1487
                %s1491 = scalar_lea.vmem %s1350, %s1490
                // While loop
                $region234: #{_cnencoder_forward.2} parent=225 // loop_pre_header
                  _
                $region235: #{_cnencoder_forward.2} parent=225 // loop_header
                  %s1493 = sphi 0, %s1495
                  %p1494 = scmp.ge.s32.totalorder %s1493, %s1486
                  %s1498 = sphi 0, %s1505
                  %s1499 = sphi %s1489, %s1508
                  %s1500 = sphi %s1491, %s1509
                $region236: #{_cnencoder_forward.2} parent=225 // loop_header_branch
                  %1497 = sbr.rel (%p1494) target = $region240
                $region237: #{_cnencoder_forward.2} parent=225 // loop_body
                  %v1501 = vld [vmem:[%s1499] sm:$0xff]
                  %1502 = vst [vmem:[%s1500] sm:$0xff] %v1501
                  %s1503 = sadd.s32 1, %s1498
                  %p1504 = scmp.ge.s32.totalorder %s1503, %s1486
                  %s1505 = scalar_select %p1504, 0, %s1503
                  %s1506 = smul.u32 %s1505, 8
                  %s1507 = smul.u32 %s1505, 8
                  %s1508 = scalar_lea.vmem %s1489, %s1506 [#allocation9]
                  %s1509 = scalar_lea.vmem %s1491, %s1507
                $region238: #{_cnencoder_forward.2} parent=225 // loop_footer
                  %s1495 = sadd.s32 %s1493, 1
                $region239: #{_cnencoder_forward.2} parent=225 // loop_footer_branch
                  %1492 = sbr.rel target = $region235
                $region240: #{_cnencoder_forward.2} parent=225 // loop_exit
                  _
              $region226: #{_cnencoder_forward.2} parent=203 // pred_fallthru
                _
              // Predicated region
              $region241: #{_cnencoder_forward.2} parent=203 // pred_check
                _
              $region242: #{_cnencoder_forward.2} parent=203 // pred_check_branch
                %1511 = sbr.rel target = $region244
              $region243: #{_cnencoder_forward.2} parent=203 // pred_region
                _
              $region244: #{_cnencoder_forward.2} parent=203 // pred_fallthru
                _
            $region204: #{_cnencoder_forward.2} parent=199 // pred_fallthru
              _
            // Predicated region
            $region205: #{_cnencoder_forward.2} parent=199 // pred_check
              _
            $region206: #{_cnencoder_forward.2} parent=199 // pred_check_branch
              %1357 = sbr.rel target = $region208
            $region207: #{_cnencoder_forward.2} parent=199 // pred_region
              %s1359 = ssub.s32 256, 1
              %s1360 = sshrl.u32 %s1346, 4
              // While loop
              $region209: #{_cnencoder_forward.2} parent=207 // loop_pre_header
                _
              $region210: #{_cnencoder_forward.2} parent=207 // loop_header
                %s1362 = sphi 0, %s1364
                %p1363 = scmp.ge.s32.totalorder %s1362, %s1360
                %s1367 = sphi 0, %s1404
                %s1368 = sphi %s816, %s1407
                %s1369 = sphi %s1350, %s1408
              $region211: #{_cnencoder_forward.2} parent=207 // loop_header_branch
                %1366 = sbr.rel (%p1363) target = $region215
              $region212: #{_cnencoder_forward.2} parent=207 // loop_body
                %v1370 = vld [vmem:[%s1368] sm:%s1359]
                %1371 = vst [vmem:[%s1369] sm:%s1359] %v1370
                %v1372 = vld [vmem:[%s1368 + $0x8] sm:%s1359]
                %1373 = vst [vmem:[%s1369 + $0x8] sm:%s1359] %v1372
                %v1374 = vld [vmem:[%s1368 + $0x10] sm:%s1359]
                %1375 = vst [vmem:[%s1369 + $0x10] sm:%s1359] %v1374
                %v1376 = vld [vmem:[%s1368 + $0x18] sm:%s1359]
                %1377 = vst [vmem:[%s1369 + $0x18] sm:%s1359] %v1376
                %v1378 = vld [vmem:[%s1368 + $0x20] sm:%s1359]
                %1379 = vst [vmem:[%s1369 + $0x20] sm:%s1359] %v1378
                %v1380 = vld [vmem:[%s1368 + $0x28] sm:%s1359]
                %1381 = vst [vmem:[%s1369 + $0x28] sm:%s1359] %v1380
                %v1382 = vld [vmem:[%s1368 + $0x30] sm:%s1359]
                %1383 = vst [vmem:[%s1369 + $0x30] sm:%s1359] %v1382
                %v1384 = vld [vmem:[%s1368 + $0x38] sm:%s1359]
                %1385 = vst [vmem:[%s1369 + $0x38] sm:%s1359] %v1384
                %v1386 = vld [vmem:[%s1368 + $0x40] sm:%s1359]
                %1387 = vst [vmem:[%s1369 + $0x40] sm:%s1359] %v1386
                %v1388 = vld [vmem:[%s1368 + $0x48] sm:%s1359]
                %1389 = vst [vmem:[%s1369 + $0x48] sm:%s1359] %v1388
                %v1390 = vld [vmem:[%s1368 + $0x50] sm:%s1359]
                %1391 = vst [vmem:[%s1369 + $0x50] sm:%s1359] %v1390
                %v1392 = vld [vmem:[%s1368 + $0x58] sm:%s1359]
                %1393 = vst [vmem:[%s1369 + $0x58] sm:%s1359] %v1392
                %v1394 = vld [vmem:[%s1368 + $0x60] sm:%s1359]
                %1395 = vst [vmem:[%s1369 + $0x60] sm:%s1359] %v1394
                %v1396 = vld [vmem:[%s1368 + $0x68] sm:%s1359]
                %1397 = vst [vmem:[%s1369 + $0x68] sm:%s1359] %v1396
                %v1398 = vld [vmem:[%s1368 + $0x70] sm:%s1359]
                %1399 = vst [vmem:[%s1369 + $0x70] sm:%s1359] %v1398
                %v1400 = vld [vmem:[%s1368 + $0x78] sm:%s1359]
                %1401 = vst [vmem:[%s1369 + $0x78] sm:%s1359] %v1400
                %s1402 = sadd.s32 1, %s1367
                %p1403 = scmp.ge.s32.totalorder %s1402, %s1360
                %s1404 = scalar_select %p1403, 0, %s1402
                %s1405 = smul.u32 %s1404, 128
                %s1406 = smul.u32 %s1404, 128
                %s1407 = scalar_lea.vmem %s816, %s1405 [#allocation9]
                %s1408 = scalar_lea.vmem %s1350, %s1406
              $region213: #{_cnencoder_forward.2} parent=207 // loop_footer
                %s1364 = sadd.s32 %s1362, 1
              $region214: #{_cnencoder_forward.2} parent=207 // loop_footer_branch
                %1361 = sbr.rel target = $region210
              $region215: #{_cnencoder_forward.2} parent=207 // loop_exit
                _
              %s1409 = sshrl.u32 %s1346, 4
              %s1410 = sand.u32 %s1346, 15
              %s1411 = smul.u32 %s1409, 16
              %s1412 = smul.u32 8, %s1411
              %s1413 = scalar_lea.vmem %s816, %s1412 [#allocation9]
              %s1414 = smul.u32 8, %s1411
              %s1415 = scalar_lea.vmem %s1350, %s1414
              // While loop
              $region216: #{_cnencoder_forward.2} parent=207 // loop_pre_header
                _
              $region217: #{_cnencoder_forward.2} parent=207 // loop_header
                %s1417 = sphi 0, %s1419
                %p1418 = scmp.ge.s32.totalorder %s1417, %s1410
                %s1422 = sphi 0, %s1429
                %s1423 = sphi %s1413, %s1432
                %s1424 = sphi %s1415, %s1433
              $region218: #{_cnencoder_forward.2} parent=207 // loop_header_branch
                %1421 = sbr.rel (%p1418) target = $region222
              $region219: #{_cnencoder_forward.2} parent=207 // loop_body
                %v1425 = vld [vmem:[%s1423] sm:%s1359]
                %1426 = vst [vmem:[%s1424] sm:%s1359] %v1425
                %s1427 = sadd.s32 1, %s1422
                %p1428 = scmp.ge.s32.totalorder %s1427, %s1410
                %s1429 = scalar_select %p1428, 0, %s1427
                %s1430 = smul.u32 %s1429, 8
                %s1431 = smul.u32 %s1429, 8
                %s1432 = scalar_lea.vmem %s1413, %s1430 [#allocation9]
                %s1433 = scalar_lea.vmem %s1415, %s1431
              $region220: #{_cnencoder_forward.2} parent=207 // loop_footer
                %s1419 = sadd.s32 %s1417, 1
              $region221: #{_cnencoder_forward.2} parent=207 // loop_footer_branch
                %1416 = sbr.rel target = $region217
              $region222: #{_cnencoder_forward.2} parent=207 // loop_exit
                _
            $region208: #{_cnencoder_forward.2} parent=199 // pred_fallthru
              _
          $region200: #{_cnencoder_forward.2} parent=195 // pred_fallthru
            _
          %1512 = vnop
        $region196: #{_cnencoder_forward.2} parent=27 // pred_fallthru
          _
        // Predicated region
        $region245: #{_cnencoder_forward.2} parent=27 // pred_check
          %p1513 = pneg %p198
        $region246: #{_cnencoder_forward.2} parent=27 // pred_check_branch
          %1515 = sbr.rel (%p1513) target = $region248
        $region247: #{_cnencoder_forward.2} parent=27 // pred_region
          %s1516 = smul.u32 16, %s24
          %s1517 = ssub.s32 40, %s1516
          %p1518 = scmp.lt.s32.totalorder %s1517, 16
          %s1519 = scalar_select %p1518, %s1517, 16
          %s1520 = smul.u32 128, %s1519
          %p1521 = scmp.ne.s32.totalorder 0, %s1520
          %s1522 = smul.addr %s1516, 8
          %s1523 = scalar_lea.vmem %s6, %s1522
          // Predicated region
          $region249: #{_cnencoder_forward.2} parent=247 // pred_check
            %p1524 = pneg %p1521
          $region250: #{_cnencoder_forward.2} parent=247 // pred_check_branch
            %1526 = sbr.rel (%p1524) target = $region252
          $region251: #{_cnencoder_forward.2} parent=247 // pred_region
            // Predicated region
            $region253: #{_cnencoder_forward.2} parent=251 // pred_check
              _
            $region254: #{_cnencoder_forward.2} parent=251 // pred_check_branch
              %1528 = sbr.rel (0) target = $region256
            $region255: #{_cnencoder_forward.2} parent=251 // pred_region
              // Predicated region
              $region275: #{_cnencoder_forward.2} parent=255 // pred_check
                _
              $region276: #{_cnencoder_forward.2} parent=255 // pred_check_branch
                %1608 = sbr.rel (0) target = $region278
              $region277: #{_cnencoder_forward.2} parent=255 // pred_region
                %s1609 = sshrl.u32 %s1519, 4
                // While loop
                $region279: #{_cnencoder_forward.2} parent=277 // loop_pre_header
                  _
                $region280: #{_cnencoder_forward.2} parent=277 // loop_header
                  %s1611 = sphi 0, %s1613
                  %p1612 = scmp.ge.s32.totalorder %s1611, %s1609
                  %s1616 = sphi 0, %s1653
                  %s1617 = sphi %s820, %s1656
                  %s1618 = sphi %s1523, %s1657
                $region281: #{_cnencoder_forward.2} parent=277 // loop_header_branch
                  %1615 = sbr.rel (%p1612) target = $region285
                $region282: #{_cnencoder_forward.2} parent=277 // loop_body
                  %v1619 = vld [vmem:[%s1617] sm:$0xff]
                  %1620 = vst [vmem:[%s1618] sm:$0xff] %v1619
                  %v1621 = vld [vmem:[%s1617 + $0x8] sm:$0xff]
                  %1622 = vst [vmem:[%s1618 + $0x8] sm:$0xff] %v1621
                  %v1623 = vld [vmem:[%s1617 + $0x10] sm:$0xff]
                  %1624 = vst [vmem:[%s1618 + $0x10] sm:$0xff] %v1623
                  %v1625 = vld [vmem:[%s1617 + $0x18] sm:$0xff]
                  %1626 = vst [vmem:[%s1618 + $0x18] sm:$0xff] %v1625
                  %v1627 = vld [vmem:[%s1617 + $0x20] sm:$0xff]
                  %1628 = vst [vmem:[%s1618 + $0x20] sm:$0xff] %v1627
                  %v1629 = vld [vmem:[%s1617 + $0x28] sm:$0xff]
                  %1630 = vst [vmem:[%s1618 + $0x28] sm:$0xff] %v1629
                  %v1631 = vld [vmem:[%s1617 + $0x30] sm:$0xff]
                  %1632 = vst [vmem:[%s1618 + $0x30] sm:$0xff] %v1631
                  %v1633 = vld [vmem:[%s1617 + $0x38] sm:$0xff]
                  %1634 = vst [vmem:[%s1618 + $0x38] sm:$0xff] %v1633
                  %v1635 = vld [vmem:[%s1617 + $0x40] sm:$0xff]
                  %1636 = vst [vmem:[%s1618 + $0x40] sm:$0xff] %v1635
                  %v1637 = vld [vmem:[%s1617 + $0x48] sm:$0xff]
                  %1638 = vst [vmem:[%s1618 + $0x48] sm:$0xff] %v1637
                  %v1639 = vld [vmem:[%s1617 + $0x50] sm:$0xff]
                  %1640 = vst [vmem:[%s1618 + $0x50] sm:$0xff] %v1639
                  %v1641 = vld [vmem:[%s1617 + $0x58] sm:$0xff]
                  %1642 = vst [vmem:[%s1618 + $0x58] sm:$0xff] %v1641
                  %v1643 = vld [vmem:[%s1617 + $0x60] sm:$0xff]
                  %1644 = vst [vmem:[%s1618 + $0x60] sm:$0xff] %v1643
                  %v1645 = vld [vmem:[%s1617 + $0x68] sm:$0xff]
                  %1646 = vst [vmem:[%s1618 + $0x68] sm:$0xff] %v1645
                  %v1647 = vld [vmem:[%s1617 + $0x70] sm:$0xff]
                  %1648 = vst [vmem:[%s1618 + $0x70] sm:$0xff] %v1647
                  %v1649 = vld [vmem:[%s1617 + $0x78] sm:$0xff]
                  %1650 = vst [vmem:[%s1618 + $0x78] sm:$0xff] %v1649
                  %s1651 = sadd.s32 1, %s1616
                  %p1652 = scmp.ge.s32.totalorder %s1651, %s1609
                  %s1653 = scalar_select %p1652, 0, %s1651
                  %s1654 = smul.u32 %s1653, 128
                  %s1655 = smul.u32 %s1653, 128
                  %s1656 = scalar_lea.vmem %s820, %s1654 [#allocation10]
                  %s1657 = scalar_lea.vmem %s1523, %s1655
                $region283: #{_cnencoder_forward.2} parent=277 // loop_footer
                  %s1613 = sadd.s32 %s1611, 1
                $region284: #{_cnencoder_forward.2} parent=277 // loop_footer_branch
                  %1610 = sbr.rel target = $region280
                $region285: #{_cnencoder_forward.2} parent=277 // loop_exit
                  _
                %s1658 = sshrl.u32 %s1519, 4
                %s1659 = sand.u32 %s1519, 15
                %s1660 = smul.u32 %s1658, 16
                %s1661 = smul.u32 8, %s1660
                %s1662 = scalar_lea.vmem %s820, %s1661 [#allocation10]
                %s1663 = smul.u32 8, %s1660
                %s1664 = scalar_lea.vmem %s1523, %s1663
                // While loop
                $region286: #{_cnencoder_forward.2} parent=277 // loop_pre_header
                  _
                $region287: #{_cnencoder_forward.2} parent=277 // loop_header
                  %s1666 = sphi 0, %s1668
                  %p1667 = scmp.ge.s32.totalorder %s1666, %s1659
                  %s1671 = sphi 0, %s1678
                  %s1672 = sphi %s1662, %s1681
                  %s1673 = sphi %s1664, %s1682
                $region288: #{_cnencoder_forward.2} parent=277 // loop_header_branch
                  %1670 = sbr.rel (%p1667) target = $region292
                $region289: #{_cnencoder_forward.2} parent=277 // loop_body
                  %v1674 = vld [vmem:[%s1672] sm:$0xff]
                  %1675 = vst [vmem:[%s1673] sm:$0xff] %v1674
                  %s1676 = sadd.s32 1, %s1671
                  %p1677 = scmp.ge.s32.totalorder %s1676, %s1659
                  %s1678 = scalar_select %p1677, 0, %s1676
                  %s1679 = smul.u32 %s1678, 8
                  %s1680 = smul.u32 %s1678, 8
                  %s1681 = scalar_lea.vmem %s1662, %s1679 [#allocation10]
                  %s1682 = scalar_lea.vmem %s1664, %s1680
                $region290: #{_cnencoder_forward.2} parent=277 // loop_footer
                  %s1668 = sadd.s32 %s1666, 1
                $region291: #{_cnencoder_forward.2} parent=277 // loop_footer_branch
                  %1665 = sbr.rel target = $region287
                $region292: #{_cnencoder_forward.2} parent=277 // loop_exit
                  _
              $region278: #{_cnencoder_forward.2} parent=255 // pred_fallthru
                _
              // Predicated region
              $region293: #{_cnencoder_forward.2} parent=255 // pred_check
                _
              $region294: #{_cnencoder_forward.2} parent=255 // pred_check_branch
                %1684 = sbr.rel target = $region296
              $region295: #{_cnencoder_forward.2} parent=255 // pred_region
                _
              $region296: #{_cnencoder_forward.2} parent=255 // pred_fallthru
                _
            $region256: #{_cnencoder_forward.2} parent=251 // pred_fallthru
              _
            // Predicated region
            $region257: #{_cnencoder_forward.2} parent=251 // pred_check
              _
            $region258: #{_cnencoder_forward.2} parent=251 // pred_check_branch
              %1530 = sbr.rel target = $region260
            $region259: #{_cnencoder_forward.2} parent=251 // pred_region
              %s1532 = ssub.s32 256, 1
              %s1533 = sshrl.u32 %s1519, 4
              // While loop
              $region261: #{_cnencoder_forward.2} parent=259 // loop_pre_header
                _
              $region262: #{_cnencoder_forward.2} parent=259 // loop_header
                %s1535 = sphi 0, %s1537
                %p1536 = scmp.ge.s32.totalorder %s1535, %s1533
                %s1540 = sphi 0, %s1577
                %s1541 = sphi %s820, %s1580
                %s1542 = sphi %s1523, %s1581
              $region263: #{_cnencoder_forward.2} parent=259 // loop_header_branch
                %1539 = sbr.rel (%p1536) target = $region267
              $region264: #{_cnencoder_forward.2} parent=259 // loop_body
                %v1543 = vld [vmem:[%s1541] sm:%s1532]
                %1544 = vst [vmem:[%s1542] sm:%s1532] %v1543
                %v1545 = vld [vmem:[%s1541 + $0x8] sm:%s1532]
                %1546 = vst [vmem:[%s1542 + $0x8] sm:%s1532] %v1545
                %v1547 = vld [vmem:[%s1541 + $0x10] sm:%s1532]
                %1548 = vst [vmem:[%s1542 + $0x10] sm:%s1532] %v1547
                %v1549 = vld [vmem:[%s1541 + $0x18] sm:%s1532]
                %1550 = vst [vmem:[%s1542 + $0x18] sm:%s1532] %v1549
                %v1551 = vld [vmem:[%s1541 + $0x20] sm:%s1532]
                %1552 = vst [vmem:[%s1542 + $0x20] sm:%s1532] %v1551
                %v1553 = vld [vmem:[%s1541 + $0x28] sm:%s1532]
                %1554 = vst [vmem:[%s1542 + $0x28] sm:%s1532] %v1553
                %v1555 = vld [vmem:[%s1541 + $0x30] sm:%s1532]
                %1556 = vst [vmem:[%s1542 + $0x30] sm:%s1532] %v1555
                %v1557 = vld [vmem:[%s1541 + $0x38] sm:%s1532]
                %1558 = vst [vmem:[%s1542 + $0x38] sm:%s1532] %v1557
                %v1559 = vld [vmem:[%s1541 + $0x40] sm:%s1532]
                %1560 = vst [vmem:[%s1542 + $0x40] sm:%s1532] %v1559
                %v1561 = vld [vmem:[%s1541 + $0x48] sm:%s1532]
                %1562 = vst [vmem:[%s1542 + $0x48] sm:%s1532] %v1561
                %v1563 = vld [vmem:[%s1541 + $0x50] sm:%s1532]
                %1564 = vst [vmem:[%s1542 + $0x50] sm:%s1532] %v1563
                %v1565 = vld [vmem:[%s1541 + $0x58] sm:%s1532]
                %1566 = vst [vmem:[%s1542 + $0x58] sm:%s1532] %v1565
                %v1567 = vld [vmem:[%s1541 + $0x60] sm:%s1532]
                %1568 = vst [vmem:[%s1542 + $0x60] sm:%s1532] %v1567
                %v1569 = vld [vmem:[%s1541 + $0x68] sm:%s1532]
                %1570 = vst [vmem:[%s1542 + $0x68] sm:%s1532] %v1569
                %v1571 = vld [vmem:[%s1541 + $0x70] sm:%s1532]
                %1572 = vst [vmem:[%s1542 + $0x70] sm:%s1532] %v1571
                %v1573 = vld [vmem:[%s1541 + $0x78] sm:%s1532]
                %1574 = vst [vmem:[%s1542 + $0x78] sm:%s1532] %v1573
                %s1575 = sadd.s32 1, %s1540
                %p1576 = scmp.ge.s32.totalorder %s1575, %s1533
                %s1577 = scalar_select %p1576, 0, %s1575
                %s1578 = smul.u32 %s1577, 128
                %s1579 = smul.u32 %s1577, 128
                %s1580 = scalar_lea.vmem %s820, %s1578 [#allocation10]
                %s1581 = scalar_lea.vmem %s1523, %s1579
              $region265: #{_cnencoder_forward.2} parent=259 // loop_footer
                %s1537 = sadd.s32 %s1535, 1
              $region266: #{_cnencoder_forward.2} parent=259 // loop_footer_branch
                %1534 = sbr.rel target = $region262
              $region267: #{_cnencoder_forward.2} parent=259 // loop_exit
                _
              %s1582 = sshrl.u32 %s1519, 4
              %s1583 = sand.u32 %s1519, 15
              %s1584 = smul.u32 %s1582, 16
              %s1585 = smul.u32 8, %s1584
              %s1586 = scalar_lea.vmem %s820, %s1585 [#allocation10]
              %s1587 = smul.u32 8, %s1584
              %s1588 = scalar_lea.vmem %s1523, %s1587
              // While loop
              $region268: #{_cnencoder_forward.2} parent=259 // loop_pre_header
                _
              $region269: #{_cnencoder_forward.2} parent=259 // loop_header
                %s1590 = sphi 0, %s1592
                %p1591 = scmp.ge.s32.totalorder %s1590, %s1583
                %s1595 = sphi 0, %s1602
                %s1596 = sphi %s1586, %s1605
                %s1597 = sphi %s1588, %s1606
              $region270: #{_cnencoder_forward.2} parent=259 // loop_header_branch
                %1594 = sbr.rel (%p1591) target = $region274
              $region271: #{_cnencoder_forward.2} parent=259 // loop_body
                %v1598 = vld [vmem:[%s1596] sm:%s1532]
                %1599 = vst [vmem:[%s1597] sm:%s1532] %v1598
                %s1600 = sadd.s32 1, %s1595
                %p1601 = scmp.ge.s32.totalorder %s1600, %s1583
                %s1602 = scalar_select %p1601, 0, %s1600
                %s1603 = smul.u32 %s1602, 8
                %s1604 = smul.u32 %s1602, 8
                %s1605 = scalar_lea.vmem %s1586, %s1603 [#allocation10]
                %s1606 = scalar_lea.vmem %s1588, %s1604
              $region272: #{_cnencoder_forward.2} parent=259 // loop_footer
                %s1592 = sadd.s32 %s1590, 1
              $region273: #{_cnencoder_forward.2} parent=259 // loop_footer_branch
                %1589 = sbr.rel target = $region269
              $region274: #{_cnencoder_forward.2} parent=259 // loop_exit
                _
            $region260: #{_cnencoder_forward.2} parent=251 // pred_fallthru
              _
          $region252: #{_cnencoder_forward.2} parent=247 // pred_fallthru
            _
          %1685 = vnop
        $region248: #{_cnencoder_forward.2} parent=27 // pred_fallthru
          _
      $region28: #{_cnencoder_forward.2} parent=5 // pred_fallthru
        _
      %p1686 = scmp.le.s32.totalorder 2, %s19
      // Predicated region
      $region297: #{_cnencoder_forward.2} parent=5 // pred_check
        %p1687 = pneg %p1686
      $region298: #{_cnencoder_forward.2} parent=5 // pred_check_branch
        %1689 = sbr.rel (%p1687) target = $region300
      $region299: #{_cnencoder_forward.2} parent=5 // pred_region
        %s1690 = ssub.s32 %s19, 2
        // Predicated region
        $region301: #{_cnencoder_forward.2} parent=299 // pred_check
          %p1691 = pneg %p100
        $region302: #{_cnencoder_forward.2} parent=299 // pred_check_branch
          %1693 = sbr.rel (%p1691) target = $region304
        $region303: #{_cnencoder_forward.2} parent=299 // pred_region
          %s1694 = sand.u32 %s85, 1
          %s1695 = sand.u32 %s85, 1
          %s1696 = smul.addr %s1695, 128
          %s1697 = scalar_lea.vmem [#allocation6], %s1696
        $region304: #{_cnencoder_forward.2} parent=299 // pred_fallthru
          _
        // Predicated region
        $region305: #{_cnencoder_forward.2} parent=299 // pred_check
          %p1698 = pneg %p126
        $region306: #{_cnencoder_forward.2} parent=299 // pred_check_branch
          %1700 = sbr.rel (%p1698) target = $region308
        $region307: #{_cnencoder_forward.2} parent=299 // pred_region
          %s1701 = sand.u32 %s111, 1
          %s1702 = sand.u32 %s111, 1
          %s1703 = smul.addr %s1702, 128
          %s1704 = scalar_lea.vmem [#allocation7], %s1703
        $region308: #{_cnencoder_forward.2} parent=299 // pred_fallthru
          _
        // Predicated region
        $region309: #{_cnencoder_forward.2} parent=299 // pred_check
          %p1705 = pneg %p152
        $region310: #{_cnencoder_forward.2} parent=299 // pred_check_branch
          %1707 = sbr.rel (%p1705) target = $region312
        $region311: #{_cnencoder_forward.2} parent=299 // pred_region
          %s1708 = sand.u32 %s137, 1
          %s1709 = sand.u32 %s137, 1
          %s1710 = smul.addr %s1709, 128
          %s1711 = scalar_lea.vmem [#allocation8], %s1710
        $region312: #{_cnencoder_forward.2} parent=299 // pred_fallthru
          _
        // Predicated region
        $region313: #{_cnencoder_forward.2} parent=299 // pred_check
          %p1712 = pneg %p178
        $region314: #{_cnencoder_forward.2} parent=299 // pred_check_branch
          %1714 = sbr.rel (%p1712) target = $region316
        $region315: #{_cnencoder_forward.2} parent=299 // pred_region
          %s1715 = sand.u32 %s163, 1
          %s1716 = sand.u32 %s163, 1
          %s1717 = smul.addr %s1716, 128
          %s1718 = scalar_lea.vmem [#allocation9], %s1717
        $region316: #{_cnencoder_forward.2} parent=299 // pred_fallthru
          _
        // Predicated region
        $region317: #{_cnencoder_forward.2} parent=299 // pred_check
          %p1719 = pneg %p204
        $region318: #{_cnencoder_forward.2} parent=299 // pred_check_branch
          %1721 = sbr.rel (%p1719) target = $region320
        $region319: #{_cnencoder_forward.2} parent=299 // pred_region
          %s1722 = sand.u32 %s189, 1
          %s1723 = sand.u32 %s189, 1
          %s1724 = smul.addr %s1723, 128
          %s1725 = scalar_lea.vmem [#allocation10], %s1724
        $region320: #{_cnencoder_forward.2} parent=299 // pred_fallthru
          _
      $region300: #{_cnencoder_forward.2} parent=5 // pred_fallthru
        _
    $region6: #{_cnencoder_forward.2} parent=1 // loop_footer
      %s23 = sadd.s32 1, %s19
    $region7: #{_cnencoder_forward.2} parent=1 // loop_footer_branch
      %18 = sbr.rel target = $region3
    $region8: #{_cnencoder_forward.2} parent=1 // loop_exit
      _
    %1726 = vsyncpa [#allocation3], 1
    %s1727 = scalar_lea.sflag [#allocation3], 1
    %1728 = vsyncpa %s1727, 1
    %1729 = vsyncpa [#allocation5], 1
    %s1730 = scalar_lea.sflag [#allocation5], 1
    %1731 = vsyncpa %s1730, 1

// kernel: _cnencoder_forward.3
$region0: #{_cnencoder_forward.3}
  #allocation0 [shape = 'u32[]', space=smem, size = 0x4, offset = 0x4, fixed_abs, tag = 'smem constant byte address 0x4 - core index']
  #allocation1 [shape = 'u32[144,128]{1,0:T(1,128)}', space=vmem, size = 0x12000, scoped, tag = 'internal scratch']
  #allocation2 [shape = 'f32[1]{0:T(128)S(6)}', space=smem, size = 0x200, scoped, tag = 'scoped memory for _cnencoder_forward.3']
  %s0 = inlined_call_operand.<no memory space> [shape: f32[1], index: 0, kind: input, shape index: {}]
  %s1 = inlined_call_operand.vmem [shape: f32[320,1], index: 1, kind: input, shape index: {}]
  %s2 = inlined_call_operand.vmem [shape: f32[320,256], index: 2, kind: input, shape index: {}]
  %s3 = inlined_call_operand.hbm [shape: f32[320,256], index: 3, kind: output, shape index: {}]
  %s4 = sld [smem:[#allocation0]]
  $region45: #{_cnencoder_forward.3} parent=0
    _
  %s6 = ssub.s32 1, %s4
  %s7 = scalar_select 0, %s6, %s4
  %8 = sst [smem:[#allocation2]] %s0
  $region1: #{_cnencoder_forward.3} parent=0
    #allocation3 [shape = 'u8[262144]{0}', space=vmem, size = 0x40000, scoped, tag = 'output window, operand 0']
    #allocation4 [shape = 's32[2]{0}', space=sflag, size = 0x8, scoped, tag = 'scoped memory for _cnencoder_forward.3']
    %9 = vsyncpa [#allocation4], 0
    %s10 = scalar_lea.sflag [#allocation4], 1
    %11 = vsyncpa %s10, 0
    loop: start=0, step=1, limit=5
    $region2: #{_cnencoder_forward.3} parent=1 // loop_pre_header
      _
    $region3: #{_cnencoder_forward.3} parent=1 // loop_header
      %s13 = sphi 0, %s17
      %p14 = scmp.ge.s32.totalorder %s13, 5
      %s21 = sphi 0, %s21
      %s23 = sphi 0, %s21
      %s24 = sphi 0, %s23
      %s38 = sphi 0, %s24
      %s44 = sphi 0, %s46
      %s47 = sphi 0, %s44
      %s48 = sphi 0, %s47
      %s64 = sphi 0, %s48
      %s70 = sphi 0, %s72
      %s73 = sphi 0, %s70
      %s74 = sphi 0, %s73
      %s90 = sphi 0, %s74
      %s96 = sphi 0, %s98
      %s99 = sphi 0, %s96
      %s100 = sphi 0, %s99
      %s116 = sphi 0, %s100
    $region4: #{_cnencoder_forward.3} parent=1 // loop_header_branch
      %16 = sbr.rel (%p14) target = $region8
    $region5: #{_cnencoder_forward.3} parent=1 // loop_body
      %s18 = ssub.s32 %s13, 1
      %s19 = ssub.s32 %s13, 2
      %s20 = sadd.s32 %s13, 1
      %s22 = sadd.s32 %s21, 1
      %p25 = scmp.eq.s32.totalorder %s13, 2
      %p26 = scmp.ne.s32.totalorder %s21, %s23
      %p27 = scmp.eq.s32.totalorder %s13, 0
      %p28 = por %p26, %p27
      %p29 = scmp.ne.s32.totalorder %s21, %s23
      %p30 = scmp.eq.s32.totalorder %s18, 2
      %p31 = por %p29, %p30
      %p32 = scmp.ne.s32.totalorder %s23, %s24
      %p33 = scmp.eq.s32.totalorder %s18, 0
      %p34 = por %p32, %p33
      %p35 = scmp.ne.s32.totalorder %s23, %s24
      %p36 = scmp.eq.s32.totalorder %s19, 2
      %p37 = por %p35, %p36
      %p39 = scmp.ne.s32.totalorder %s24, %s38
      %p40 = scmp.eq.s32.totalorder %s19, 0
      %p41 = por %p39, %p40
      %s42 = ssub.s32 %s13, %s20
      %p43 = scmp.eq.s32.totalorder %s42, 0
      %s45 = sadd.s32 %s44, 1
      %s46 = scalar_select %p43, %s44, %s45
      %p49 = pneg %p43
      %p50 = scmp.eq.s32.totalorder %s13, 2
      %p51 = por %p49, %p50
      %p52 = scmp.ne.s32.totalorder %s44, %s47
      %p53 = scmp.eq.s32.totalorder %s13, 0
      %p54 = por %p52, %p53
      %p55 = scmp.ne.s32.totalorder %s44, %s47
      %p56 = scmp.eq.s32.totalorder %s18, 2
      %p57 = por %p55, %p56
      %p58 = scmp.ne.s32.totalorder %s47, %s48
      %p59 = scmp.eq.s32.totalorder %s18, 0
      %p60 = por %p58, %p59
      %p61 = scmp.ne.s32.totalorder %s47, %s48
      %p62 = scmp.eq.s32.totalorder %s19, 2
      %p63 = por %p61, %p62
      %p65 = scmp.ne.s32.totalorder %s48, %s64
      %p66 = scmp.eq.s32.totalorder %s19, 0
      %p67 = por %p65, %p66
      %s68 = ssub.s32 %s13, %s20
      %p69 = scmp.eq.s32.totalorder %s68, 0
      %s71 = sadd.s32 %s70, 1
      %s72 = scalar_select %p69, %s70, %s71
      %p75 = pneg %p69
      %p76 = scmp.eq.s32.totalorder %s13, 2
      %p77 = por %p75, %p76
      %p78 = scmp.ne.s32.totalorder %s70, %s73
      %p79 = scmp.eq.s32.totalorder %s13, 0
      %p80 = por %p78, %p79
      %p81 = scmp.ne.s32.totalorder %s70, %s73
      %p82 = scmp.eq.s32.totalorder %s18, 2
      %p83 = por %p81, %p82
      %p84 = scmp.ne.s32.totalorder %s73, %s74
      %p85 = scmp.eq.s32.totalorder %s18, 0
      %p86 = por %p84, %p85
      %p87 = scmp.ne.s32.totalorder %s73, %s74
      %p88 = scmp.eq.s32.totalorder %s19, 2
      %p89 = por %p87, %p88
      %p91 = scmp.ne.s32.totalorder %s74, %s90
      %p92 = scmp.eq.s32.totalorder %s19, 0
      %p93 = por %p91, %p92
      %s94 = ssub.s32 %s13, %s20
      %p95 = scmp.eq.s32.totalorder %s94, 0
      %s97 = sadd.s32 %s96, 1
      %s98 = scalar_select %p95, %s96, %s97
      %p101 = pneg %p95
      %p102 = scmp.eq.s32.totalorder %s13, 2
      %p103 = por %p101, %p102
      %p104 = scmp.ne.s32.totalorder %s96, %s99
      %p105 = scmp.eq.s32.totalorder %s13, 0
      %p106 = por %p104, %p105
      %p107 = scmp.ne.s32.totalorder %s96, %s99
      %p108 = scmp.eq.s32.totalorder %s18, 2
      %p109 = por %p107, %p108
      %p110 = scmp.ne.s32.totalorder %s99, %s100
      %p111 = scmp.eq.s32.totalorder %s18, 0
      %p112 = por %p110, %p111
      %p113 = scmp.ne.s32.totalorder %s99, %s100
      %p114 = scmp.eq.s32.totalorder %s19, 2
      %p115 = por %p113, %p114
      %p117 = scmp.ne.s32.totalorder %s100, %s116
      %p118 = scmp.eq.s32.totalorder %s19, 0
      %p119 = por %p117, %p118
      %p120 = scmp.le.s32.totalorder 1, %s13
      %p121 = scmp.lt.s32.totalorder %s13, 4
      %p122 = pnand %p120, %p121
      %p123 = pneg %p122
      // Predicated region
      $region9: #{_cnencoder_forward.3} parent=5 // pred_check
        _
      $region10: #{_cnencoder_forward.3} parent=5 // pred_check_branch
        %125 = sbr.rel (%p122) target = $region12
      $region11: #{_cnencoder_forward.3} parent=5 // pred_region
        %s126 = ssub.s32 %s13, 1
        // Predicated region
        $region13: #{_cnencoder_forward.3} parent=11 // pred_check
          %p127 = pneg %p34
        $region14: #{_cnencoder_forward.3} parent=11 // pred_check_branch
          %129 = sbr.rel (%p127) target = $region16
        $region15: #{_cnencoder_forward.3} parent=11 // pred_region
          _
        $region16: #{_cnencoder_forward.3} parent=11 // pred_fallthru
          _
      $region12: #{_cnencoder_forward.3} parent=5 // pred_fallthru
        _
      %p130 = scmp.lt.s32.totalorder %s13, 3
      // Predicated region
      $region17: #{_cnencoder_forward.3} parent=5 // pred_check
        %p131 = pneg %p130
      $region18: #{_cnencoder_forward.3} parent=5 // pred_check_branch
        %133 = sbr.rel (%p131) target = $region20
      $region19: #{_cnencoder_forward.3} parent=5 // pred_region
        // Predicated region
        $region21: #{_cnencoder_forward.3} parent=19 // pred_check
          %p134 = pneg %p54
        $region22: #{_cnencoder_forward.3} parent=19 // pred_check_branch
          %136 = sbr.rel (%p134) target = $region24
        $region23: #{_cnencoder_forward.3} parent=19 // pred_region
          %s137 = smul.u32 16, %s13
          %s138 = ssub.s32 40, %s137
          %p139 = scmp.lt.s32.totalorder %s138, 16
          %s140 = scalar_select %p139, %s138, 16
          %s141 = smul.u32 128, %s140
          %p142 = scmp.lt.s32.totalorder %s137, 39
          %s143 = scalar_select %p142, %s137, 39
          %s144 = smul.addr %s143, 8
          %s145 = scalar_lea.vmem %s1, %s144
          %s146 = smul.u32 16, %s13
          %s147 = ssub.s32 40, %s146
          %p148 = scmp.lt.s32.totalorder %s147, 16
          %s149 = scalar_select %p148, %s147, 16
          %s150 = smul.u32 128, %s149
        $region24: #{_cnencoder_forward.3} parent=19 // pred_fallthru
          _
        // Predicated region
        $region25: #{_cnencoder_forward.3} parent=19 // pred_check
          %p151 = pneg %p80
        $region26: #{_cnencoder_forward.3} parent=19 // pred_check_branch
          %153 = sbr.rel (%p151) target = $region28
        $region27: #{_cnencoder_forward.3} parent=19 // pred_region
          %s154 = smul.u32 16, %s13
          %s155 = ssub.s32 40, %s154
          %p156 = scmp.lt.s32.totalorder %s155, 16
          %s157 = scalar_select %p156, %s155, 16
          %s158 = smul.u32 128, %s157
          %s159 = smul.u32 %s158, 2
          %p160 = scmp.lt.s32.totalorder %s154, 39
          %s161 = scalar_select %p160, %s154, 39
          %s162 = smul.addr %s161, 2
          %s163 = smul.addr %s162, 8
          %s164 = scalar_lea.vmem %s2, %s163
          %s165 = smul.u32 16, %s13
          %s166 = ssub.s32 40, %s165
          %p167 = scmp.lt.s32.totalorder %s166, 16
          %s168 = scalar_select %p167, %s166, 16
          %s169 = smul.u32 128, %s168
          %s170 = smul.u32 %s169, 2
        $region28: #{_cnencoder_forward.3} parent=19 // pred_fallthru
          _
      $region20: #{_cnencoder_forward.3} parent=5 // pred_fallthru
        _
      %p171 = scmp.le.s32.totalorder 1, %s13
      %p172 = scmp.lt.s32.totalorder %s13, 4
      %p173 = pnand %p171, %p172
      %p174 = pneg %p173
      // Predicated region
      $region29: #{_cnencoder_forward.3} parent=5 // pred_check
        _
      $region30: #{_cnencoder_forward.3} parent=5 // pred_check_branch
        %176 = sbr.rel (%p173) target = $region32
      $region31: #{_cnencoder_forward.3} parent=5 // pred_region
        %s177 = ssub.s32 %s13, 1
        %p178 = pneg %p34
        %p179 = pneg %p31
        %s180 = smul.u32 16, %s18
        %s181 = ssub.s32 40, %s180
        %p182 = scmp.lt.s32.totalorder %s181, 16
        %s183 = scalar_select %p182, %s181, 16
        %s184 = smul.u32 128, %s183
        %p185 = scmp.lt.s32.totalorder %s180, 39
        %s186 = scalar_select %p185, %s180, 39
        %s187 = smul.addr %s186, 8
        %s188 = scalar_lea.vmem %s1, %s187
        %p189 = pneg %p60
        %p190 = pneg %p57
        %s191 = smul.u32 16, %s18
        %s192 = ssub.s32 40, %s191
        %p193 = scmp.lt.s32.totalorder %s192, 16
        %s194 = scalar_select %p193, %s192, 16
        %s195 = smul.u32 128, %s194
        %s196 = smul.u32 %s195, 2
        %p197 = scmp.lt.s32.totalorder %s191, 39
        %s198 = scalar_select %p197, %s191, 39
        %s199 = smul.addr %s198, 2
        %s200 = smul.addr %s199, 8
        %s201 = scalar_lea.vmem %s2, %s200
        %p202 = pneg %p86
        %p203 = pneg %p83
        %p204 = pneg %p112
        %p205 = pneg %p109
        %s206 = sand.u32 %s99, 1
        %s207 = scalar_lea.sflag [#allocation4], %s206
        %s208 = sand.u32 %s99, 1
        %s209 = smul.addr %s208, 256
        %s210 = scalar_lea.vmem [#allocation3], %s209
        %s211 = smul.u32 16, %s18
        %s212 = ssub.s32 40, %s211
        %p213 = scmp.lt.s32.totalorder %s212, 16
        %s214 = scalar_select %p213, %s212, 16
        %s215 = smul.u32 128, %s214
        %p216 = scmp.lt.s32.totalorder %s211, 39
        %s217 = scalar_select %p216, %s211, 39
        %s218 = smul.addr %s217, 8
        %s219 = scalar_lea.vmem %s1, %s218
        %s220 = smul.u32 16, %s18
        %s221 = ssub.s32 40, %s220
        %p222 = scmp.lt.s32.totalorder %s221, 16
        %s223 = scalar_select %p222, %s221, 16
        %s224 = smul.u32 128, %s223
        %s225 = smul.u32 16, %s18
        %s226 = ssub.s32 40, %s225
        %p227 = scmp.lt.s32.totalorder %s226, 16
        %s228 = scalar_select %p227, %s226, 16
        %s229 = smul.u32 128, %s228
        %s230 = smul.u32 %s229, 2
        %p231 = scmp.lt.s32.totalorder %s225, 39
        %s232 = scalar_select %p231, %s225, 39
        %s233 = smul.addr %s232, 2
        %s234 = smul.addr %s233, 8
        %s235 = scalar_lea.vmem %s2, %s234
        %s236 = smul.u32 16, %s18
        %s237 = ssub.s32 40, %s236
        %p238 = scmp.lt.s32.totalorder %s237, 16
        %s239 = scalar_select %p238, %s237, 16
        %s240 = smul.u32 128, %s239
        %s241 = smul.u32 %s240, 2
        %s242 = smul.u32 16, %s18
        %s243 = ssub.s32 40, %s242
        %p244 = scmp.lt.s32.totalorder %s243, 16
        %s245 = scalar_select %p244, %s243, 16
        %s246 = smul.u32 128, %s245
        %s247 = smul.u32 %s246, 2
        %v248 = vld [vmem:[%s235] sm:$0xff]
        %v249 = vld [vmem:[%s235 + $0x8] sm:$0xff]
        %v250 = vld [vmem:[%s235 + $0x10] sm:$0xff]
        %v251 = vld [vmem:[%s235 + $0x18] sm:$0xff]
        %v252 = vld [vmem:[%s235 + $0x20] sm:$0xff]
        %v253 = vld [vmem:[%s235 + $0x28] sm:$0xff]
        %v254 = vld [vmem:[%s235 + $0x30] sm:$0xff]
        %v255 = vld [vmem:[%s235 + $0x38] sm:$0xff]
        %v256 = vld [vmem:[%s235 + $0x40] sm:$0xff]
        %v257 = vld [vmem:[%s235 + $0x48] sm:$0xff]
        %v258 = vld [vmem:[%s235 + $0x50] sm:$0xff]
        %v259 = vld [vmem:[%s235 + $0x58] sm:$0xff]
        %v260 = vld [vmem:[%s235 + $0x60] sm:$0xff]
        %v261 = vld [vmem:[%s235 + $0x68] sm:$0xff]
        %v262 = vld [vmem:[%s235 + $0x70] sm:$0xff]
        %v263 = vld [vmem:[%s235 + $0x78] sm:$0xff]
        %v264 = vld [vmem:[%s235 + $0x80] sm:$0xff]
        %v265 = vld [vmem:[%s235 + $0x88] sm:$0xff]
        %v266 = vld [vmem:[%s235 + $0x90] sm:$0xff]
        %v267 = vld [vmem:[%s235 + $0x98] sm:$0xff]
        %v268 = vld [vmem:[%s235 + $0xa0] sm:$0xff]
        %v269 = vld [vmem:[%s235 + $0xa8] sm:$0xff]
        %v270 = vld [vmem:[%s235 + $0xb0] sm:$0xff]
        %v271 = vld [vmem:[%s235 + $0xb8] sm:$0xff]
        %v272 = vld [vmem:[%s235 + $0xc0] sm:$0xff]
        %v273 = vld [vmem:[%s235 + $0xc8] sm:$0xff]
        %v274 = vld [vmem:[%s235 + $0xd0] sm:$0xff]
        %v275 = vld [vmem:[%s235 + $0xd8] sm:$0xff]
        %v276 = vld [vmem:[%s235 + $0xe0] sm:$0xff]
        %v277 = vld [vmem:[%s235 + $0xe8] sm:$0xff]
        %v278 = vld [vmem:[%s235 + $0xf0] sm:$0xff]
        %v279 = vld [vmem:[%s235 + $0xf8] sm:$0xff]
        %v280 = vld [vmem:[%s219] sm:$0xff]
        %v281 = vld [vmem:[%s219 + $0x8] sm:$0xff]
        %v282 = vld [vmem:[%s219 + $0x10] sm:$0xff]
        %v283 = vld [vmem:[%s219 + $0x18] sm:$0xff]
        %v284 = vld [vmem:[%s219 + $0x20] sm:$0xff]
        %v285 = vld [vmem:[%s219 + $0x28] sm:$0xff]
        %v286 = vld [vmem:[%s219 + $0x30] sm:$0xff]
        %v287 = vld [vmem:[%s219 + $0x38] sm:$0xff]
        %v288 = vld [vmem:[%s219 + $0x40] sm:$0xff]
        %v289 = vld [vmem:[%s219 + $0x48] sm:$0xff]
        %v290 = vld [vmem:[%s219 + $0x50] sm:$0xff]
        %v291 = vld [vmem:[%s219 + $0x58] sm:$0xff]
        %v292 = vld [vmem:[%s219 + $0x60] sm:$0xff]
        %v293 = vld [vmem:[%s219 + $0x68] sm:$0xff]
        %v294 = vld [vmem:[%s219 + $0x70] sm:$0xff]
        %v295 = vld [vmem:[%s219 + $0x78] sm:$0xff]
        %297 = vset.pattern.permute.xlu0 0
        %298 = vperm.xlu0 %297, %v280
        %v299 = vpop.permute.xlu0 %298
        %302 = vset.pattern.permute.xlu0 0
        %303 = vperm.xlu0 %302, %v281
        %v304 = vpop.permute.xlu0 %303
        %307 = vset.pattern.permute.xlu0 0
        %308 = vperm.xlu0 %307, %v282
        %v309 = vpop.permute.xlu0 %308
        %312 = vset.pattern.permute.xlu0 0
        %313 = vperm.xlu0 %312, %v283
        %v314 = vpop.permute.xlu0 %313
        %317 = vset.pattern.permute.xlu0 0
        %318 = vperm.xlu0 %317, %v284
        %v319 = vpop.permute.xlu0 %318
        %322 = vset.pattern.permute.xlu0 0
        %323 = vperm.xlu0 %322, %v285
        %v324 = vpop.permute.xlu0 %323
        %327 = vset.pattern.permute.xlu0 0
        %328 = vperm.xlu0 %327, %v286
        %v329 = vpop.permute.xlu0 %328
        %332 = vset.pattern.permute.xlu0 0
        %333 = vperm.xlu0 %332, %v287
        %v334 = vpop.permute.xlu0 %333
        %337 = vset.pattern.permute.xlu0 0
        %338 = vperm.xlu0 %337, %v288
        %v339 = vpop.permute.xlu0 %338
        %342 = vset.pattern.permute.xlu0 0
        %343 = vperm.xlu0 %342, %v289
        %v344 = vpop.permute.xlu0 %343
        %347 = vset.pattern.permute.xlu0 0
        %348 = vperm.xlu0 %347, %v290
        %v349 = vpop.permute.xlu0 %348
        %352 = vset.pattern.permute.xlu0 0
        %353 = vperm.xlu0 %352, %v291
        %v354 = vpop.permute.xlu0 %353
        %357 = vset.pattern.permute.xlu0 0
        %358 = vperm.xlu0 %357, %v292
        %v359 = vpop.permute.xlu0 %358
        %362 = vset.pattern.permute.xlu0 0
        %363 = vperm.xlu0 %362, %v293
        %v364 = vpop.permute.xlu0 %363
        %367 = vset.pattern.permute.xlu0 0
        %368 = vperm.xlu0 %367, %v294
        %v369 = vpop.permute.xlu0 %368
        %372 = vset.pattern.permute.xlu0 0
        %373 = vperm.xlu0 %372, %v295
        %v374 = vpop.permute.xlu0 %373
        %v376 = vmul.f32 %v248, %v299
        %v377 = vmul.f32 %v249, %v299
        %v378 = vmul.f32 %v250, %v304
        %v379 = vmul.f32 %v251, %v304
        %v380 = vmul.f32 %v252, %v309
        %v381 = vmul.f32 %v253, %v309
        %v382 = vmul.f32 %v254, %v314
        %v383 = vmul.f32 %v255, %v314
        %v384 = vmul.f32 %v256, %v319
        %v385 = vmul.f32 %v257, %v319
        %v386 = vmul.f32 %v258, %v324
        %v387 = vmul.f32 %v259, %v324
        %v388 = vmul.f32 %v260, %v329
        %v389 = vmul.f32 %v261, %v329
        %v390 = vmul.f32 %v262, %v334
        %v391 = vmul.f32 %v263, %v334
        %v392 = vmul.f32 %v264, %v339
        %v393 = vmul.f32 %v265, %v339
        %v394 = vmul.f32 %v266, %v344
        %v395 = vmul.f32 %v267, %v344
        %v396 = vmul.f32 %v268, %v349
        %v397 = vmul.f32 %v269, %v349
        %v398 = vmul.f32 %v270, %v354
        %v399 = vmul.f32 %v271, %v354
        %v400 = vmul.f32 %v272, %v359
        %v401 = vmul.f32 %v273, %v359
        %v402 = vmul.f32 %v274, %v364
        %v403 = vmul.f32 %v275, %v364
        %v404 = vmul.f32 %v276, %v369
        %v405 = vmul.f32 %v277, %v369
        %v406 = vmul.f32 %v278, %v374
        %v407 = vmul.f32 %v279, %v374
        %s408 = sld [smem:[#allocation2]]
        %v409 = vstv %s408
        %v410 = vadd.f32 %v376, %v409
        %v411 = vadd.f32 %v377, %v409
        %v412 = vadd.f32 %v378, %v409
        %v413 = vadd.f32 %v379, %v409
        %v414 = vadd.f32 %v380, %v409
        %v415 = vadd.f32 %v381, %v409
        %v416 = vadd.f32 %v382, %v409
        %v417 = vadd.f32 %v383, %v409
        %v418 = vadd.f32 %v384, %v409
        %v419 = vadd.f32 %v385, %v409
        %v420 = vadd.f32 %v386, %v409
        %v421 = vadd.f32 %v387, %v409
        %v422 = vadd.f32 %v388, %v409
        %v423 = vadd.f32 %v389, %v409
        %v424 = vadd.f32 %v390, %v409
        %v425 = vadd.f32 %v391, %v409
        %v426 = vadd.f32 %v392, %v409
        %v427 = vadd.f32 %v393, %v409
        %v428 = vadd.f32 %v394, %v409
        %v429 = vadd.f32 %v395, %v409
        %v430 = vadd.f32 %v396, %v409
        %v431 = vadd.f32 %v397, %v409
        %v432 = vadd.f32 %v398, %v409
        %v433 = vadd.f32 %v399, %v409
        %v434 = vadd.f32 %v400, %v409
        %v435 = vadd.f32 %v401, %v409
        %v436 = vadd.f32 %v402, %v409
        %v437 = vadd.f32 %v403, %v409
        %v438 = vadd.f32 %v404, %v409
        %v439 = vadd.f32 %v405, %v409
        %v440 = vadd.f32 %v406, %v409
        %v441 = vadd.f32 %v407, %v409
        %442 = vst [vmem:[%s210] sm:$0xff] %v410
        %443 = vst [vmem:[%s210 + $0x8] sm:$0xff] %v411
        %444 = vst [vmem:[%s210 + $0x10] sm:$0xff] %v412
        %445 = vst [vmem:[%s210 + $0x18] sm:$0xff] %v413
        %446 = vst [vmem:[%s210 + $0x20] sm:$0xff] %v414
        %447 = vst [vmem:[%s210 + $0x28] sm:$0xff] %v415
        %448 = vst [vmem:[%s210 + $0x30] sm:$0xff] %v416
        %449 = vst [vmem:[%s210 + $0x38] sm:$0xff] %v417
        %450 = vst [vmem:[%s210 + $0x40] sm:$0xff] %v418
        %451 = vst [vmem:[%s210 + $0x48] sm:$0xff] %v419
        %452 = vst [vmem:[%s210 + $0x50] sm:$0xff] %v420
        %453 = vst [vmem:[%s210 + $0x58] sm:$0xff] %v421
        %454 = vst [vmem:[%s210 + $0x60] sm:$0xff] %v422
        %455 = vst [vmem:[%s210 + $0x68] sm:$0xff] %v423
        %456 = vst [vmem:[%s210 + $0x70] sm:$0xff] %v424
        %457 = vst [vmem:[%s210 + $0x78] sm:$0xff] %v425
        %458 = vst [vmem:[%s210 + $0x80] sm:$0xff] %v426
        %459 = vst [vmem:[%s210 + $0x88] sm:$0xff] %v427
        %460 = vst [vmem:[%s210 + $0x90] sm:$0xff] %v428
        %461 = vst [vmem:[%s210 + $0x98] sm:$0xff] %v429
        %462 = vst [vmem:[%s210 + $0xa0] sm:$0xff] %v430
        %463 = vst [vmem:[%s210 + $0xa8] sm:$0xff] %v431
        %464 = vst [vmem:[%s210 + $0xb0] sm:$0xff] %v432
        %465 = vst [vmem:[%s210 + $0xb8] sm:$0xff] %v433
        %466 = vst [vmem:[%s210 + $0xc0] sm:$0xff] %v434
        %467 = vst [vmem:[%s210 + $0xc8] sm:$0xff] %v435
        %468 = vst [vmem:[%s210 + $0xd0] sm:$0xff] %v436
        %469 = vst [vmem:[%s210 + $0xd8] sm:$0xff] %v437
        %470 = vst [vmem:[%s210 + $0xe0] sm:$0xff] %v438
        %471 = vst [vmem:[%s210 + $0xe8] sm:$0xff] %v439
        %472 = vst [vmem:[%s210 + $0xf0] sm:$0xff] %v440
        %473 = vst [vmem:[%s210 + $0xf8] sm:$0xff] %v441
        %s474 = sand.u32 %s99, 1
        %s475 = scalar_lea.sflag [#allocation4], %s474
        %s476 = sand.u32 %s99, 1
        %s477 = smul.addr %s476, 256
        %s478 = scalar_lea.vmem [#allocation3], %s477
        // Predicated region
        $region33: #{_cnencoder_forward.3} parent=31 // pred_check
          %p479 = pneg %p109
        $region34: #{_cnencoder_forward.3} parent=31 // pred_check_branch
          %481 = sbr.rel (%p479) target = $region36
        $region35: #{_cnencoder_forward.3} parent=31 // pred_region
          %s482 = smul.u32 16, %s18
          %s483 = ssub.s32 40, %s482
          %p484 = scmp.lt.s32.totalorder %s483, 16
          %s485 = scalar_select %p484, %s483, 16
          %s486 = smul.u32 128, %s485
          %s487 = smul.u32 %s486, 2
          %s489 = ssub.s32 4096, %s487
          %490 = vsyncadd %s475, %s489
          %p491 = scmp.ne.s32.totalorder 0, %s487
          %s492 = smul.addr %s482, 2
          %s493 = smul.addr %s492, 128
          %s494 = scalar_lea.hbm %s3, %s493
          %s495 = smul.u32 16, %s485
          %s496 = sshll.u32 %s478, 4
          %s497 = int_to_ptr.vmem [resolvable:$true] %s496
          %s498 = sshll.u32 %s495, 4
          %502 = dma.vmem_to_hbm [thread:$0]  (%p491), %s497, %s498, %s494, %s475, 256, 256, 16
        $region36: #{_cnencoder_forward.3} parent=31 // pred_fallthru
          _
      $region32: #{_cnencoder_forward.3} parent=5 // pred_fallthru
        _
      %p503 = scmp.le.s32.totalorder 2, %s13
      // Predicated region
      $region37: #{_cnencoder_forward.3} parent=5 // pred_check
        %p504 = pneg %p503
      $region38: #{_cnencoder_forward.3} parent=5 // pred_check_branch
        %506 = sbr.rel (%p504) target = $region40
      $region39: #{_cnencoder_forward.3} parent=5 // pred_region
        %s507 = ssub.s32 %s13, 2
        // Predicated region
        $region41: #{_cnencoder_forward.3} parent=39 // pred_check
          %p508 = pneg %p115
        $region42: #{_cnencoder_forward.3} parent=39 // pred_check_branch
          %510 = sbr.rel (%p508) target = $region44
        $region43: #{_cnencoder_forward.3} parent=39 // pred_region
          %s511 = sand.u32 %s100, 1
          %s512 = scalar_lea.sflag [#allocation4], %s511
          %s513 = sand.u32 %s100, 1
          %s514 = smul.addr %s513, 256
          %s515 = scalar_lea.vmem [#allocation3], %s514
          %516 = dma.done %s512, 4096
        $region44: #{_cnencoder_forward.3} parent=39 // pred_fallthru
          _
      $region40: #{_cnencoder_forward.3} parent=5 // pred_fallthru
        _
    $region6: #{_cnencoder_forward.3} parent=1 // loop_footer
      %s17 = sadd.s32 1, %s13
    $region7: #{_cnencoder_forward.3} parent=1 // loop_footer_branch
      %12 = sbr.rel target = $region3
    $region8: #{_cnencoder_forward.3} parent=1 // loop_exit
      _
    %517 = vsyncpa [#allocation4], 1
    %s518 = scalar_lea.sflag [#allocation4], 1
    %519 = vsyncpa %s518, 1

</llo_original>
